<compile_context>
chip_gen: v6e
topology: v6e:2x2x1
jax: 0.10.0
libtpu: 0.0.40
codegen_flags: <defaults>
</compile_context>

<pallas_src>
import functools

import jax
import jax.numpy as jnp
from jax.experimental import pallas as pl
from jax.experimental.pallas import tpu as pltpu


# ----------------------------------------------------------------------------
# Hardware-aware VMEM budget (v5e/v6e: 128 MiB physical, v7x: 64 MiB).
# ----------------------------------------------------------------------------
@functools.lru_cache(maxsize=None)
def _vmem_limit_bytes():
    mib = 1024 * 1024
    try:
        cap = int(pltpu.get_tpu_info().vmem_capacity_bytes)
    except Exception:
        cap = 64 * mib                       # conservative (v7x-sized) fallback
    if cap >= 128 * mib:
        return 96 * mib                      # v5e / v6e
    return max(32 * mib, min(44 * mib, int(cap * 0.7)))   # v7x-sized parts


# ----------------------------------------------------------------------------
# Tiling helpers.
# ----------------------------------------------------------------------------
def _pick_tile(n, pref, align):
    """Largest tile <= pref that divides n and is a multiple of `align`,
    falling back to the full dim (always a legal block size)."""
    if n <= pref:
        return n
    t = (pref // align) * align
    while t >= align:
        if n % t == 0:
            return t
        t -= align
    return n


# ----------------------------------------------------------------------------
# Tiled matmul kernel (fused QKV projection and output projection).
# bf16 MXU operands, f32 VMEM accumulator, M/N "parallel", K reduction.
# ----------------------------------------------------------------------------
def _matmul_kernel(x_ref, w_ref, o_ref, acc_ref):
    @pl.when(pl.program_id(2) == 0)
    def _():
        acc_ref[...] = jnp.zeros_like(acc_ref)

    acc_ref[...] += jnp.dot(x_ref[...], w_ref[...],
                            preferred_element_type=jnp.float32)

    @pl.when(pl.program_id(2) == pl.num_programs(2) - 1)
    def _():
        o_ref[...] = acc_ref[...].astype(o_ref.dtype)


def pallas_matmul(x, w, *, out_dtype=None, tm_pref=512, tn_pref=512, tk_pref=512):
    """x: (M, K), w: (K, N) -> (M, N)."""
    M, K = x.shape
    K2, N = w.shape
    assert K == K2
    out_dtype = out_dtype or x.dtype
    sub_align = 16 if x.dtype == jnp.bfloat16 else 8   # bf16 packs 2 rows/sublane
    tm = _pick_tile(M, tm_pref, sub_align)
    tn = _pick_tile(N, tn_pref, 128)
    tk = _pick_tile(K, tk_pref, 128)
    grid = (M // tm, N // tn, K // tk)
    return pl.pallas_call(
        _matmul_kernel,
        out_shape=jax.ShapeDtypeStruct((M, N), out_dtype),
        grid=grid,
        in_specs=[
            pl.BlockSpec((tm, tk), lambda i, j, k: (i, k)),
            pl.BlockSpec((tk, tn), lambda i, j, k: (k, j)),
        ],
        out_specs=pl.BlockSpec((tm, tn), lambda i, j, k: (i, j)),
        scratch_shapes=[pltpu.VMEM((tm, tn), jnp.float32)],
        compiler_params=pltpu.CompilerParams(
            dimension_semantics=("parallel", "parallel", "arbitrary"),
            vmem_limit_bytes=_vmem_limit_bytes()),
    )(x, w)


# ----------------------------------------------------------------------------
# Chunked causal linear attention kernel.
#   grid = (B, n_head_groups, L/chunk); chunk axis innermost ("arbitrary") so
#   the per-(batch, group) KV state scratch carries across chunks and is reset
#   at chunk == 0.  Input is the pre-composed packed [q1|q2|k1|k2|v] slab.
# ----------------------------------------------------------------------------
def _linattn_kernel(
    qkv_ref,                 # (1, chunk, heads*(4*dk + dv)) bf16, one head group
    bias_ref,                # (1, 4*heads*dk) f32, [b1q*scale | b2q | b1k | b2k]
    g_ref,                   # (1, dv) f32 RMSNorm gain (shared across heads)
    o_ref,                   # (1, chunk, heads*dv) -- merged 'b l (h d)' layout
    state_ref,               # (dk, heads*dv) f32 VMEM scratch, lane-packed
    *, heads, dk, dv, eps,
):
    c = pl.program_id(2)

    # New (batch, head-group) row starts -> reset the running KV state.
    # NOTE: relies on the chunk axis being the innermost grid axis.
    @pl.when(c == 0)
    def _():
        state_ref[...] = jnp.zeros_like(state_ref)

    chunk = qkv_ref.shape[1]
    hw = heads * dk
    qk_w = 4 * hw

    # In-kernel causal mask (hoisted out of the head loop).
    row = jax.lax.broadcasted_iota(jnp.int32, (chunk, chunk), 0)
    col = jax.lax.broadcasted_iota(jnp.int32, (chunk, chunk), 1)
    causal = row >= col

    # Feature map is now just: bias add + elementwise product on lane-dense
    # full-width slabs (the linears were pre-composed into the projection;
    # the q scale is folded into the q1 branch).
    qk = qkv_ref[0, :, :qk_w].astype(jnp.float32) + bias_ref[...]
    phi_q = (qk[:, :hw] * qk[:, hw:2 * hw]).astype(jnp.bfloat16)
    phi_k = qk[:, 2 * hw:3 * hw] * qk[:, 3 * hw:]          # keep f32; transposed below
    v_all = qkv_ref[0, :, qk_w:]                           # (chunk, heads*dv) bf16
    gain = g_ref[...]                                      # (1, dv) f32

    for h in range(heads):     # static unroll; per-head live ranges are bounded
        q_h = phi_q[:, h * dk:(h + 1) * dk]                          # (chunk, dk) bf16
        kt_h = phi_k[:, h * dk:(h + 1) * dk].T.astype(jnp.bfloat16)  # (dk, chunk), one
        v_h = v_all[:, h * dv:(h + 1) * dv]                          # transpose, reused

        # Intra-chunk causal attention.
        attn = jnp.dot(q_h, kt_h, preferred_element_type=jnp.float32)
        attn = jnp.where(causal, attn, 0.0).astype(jnp.bfloat16)
        o = jnp.dot(attn, v_h, preferred_element_type=jnp.float32)

        # Inter-chunk contribution from the running state S = sum k^T v.
        st = state_ref[:, h * dv:(h + 1) * dv]                       # (dk, dv) f32
        o = o + jnp.dot(q_h, st.astype(jnp.bfloat16),
                        preferred_element_type=jnp.float32)

        # State update reuses kt_h (no second transpose); accumulate in f32.
        state_ref[:, h * dv:(h + 1) * dv] = st + jnp.dot(
            kt_h, v_h, preferred_element_type=jnp.float32)

        # Per-head RMSNorm over head_v_dim (f32), direct lane-slice store.
        o = o * jax.lax.rsqrt(jnp.mean(o * o, axis=-1, keepdims=True) + eps) * gain
        o_ref[0, :, h * dv:(h + 1) * dv] = o.astype(o_ref.dtype)


def chunk_linear_attn_pallas(qkv, bias, gain, *, num_heads, n_groups, dk, dv,
                             chunk, eps, out_dtype):
    """qkv: (B, L, 4*key_dim + value_dim) packed per head group.
    Returns (B, L, value_dim) already in merged 'b l (h d)' layout."""
    B, L, total = qkv.shape
    hg = num_heads // n_groups
    wg = hg * (4 * dk + dv)
    assert total == n_groups * wg
    assert L % chunk == 0
    nc = L // chunk

    kern = functools.partial(_linattn_kernel, heads=hg, dk=dk, dv=dv, eps=eps)

    return pl.pallas_call(
        kern,
        out_shape=jax.ShapeDtypeStruct((B, L, n_groups * hg * dv), out_dtype),
        grid=(B, n_groups, nc),
        in_specs=[
            pl.BlockSpec((1, chunk, wg), lambda b, g, c: (b, c, g)),
            pl.BlockSpec((1, 4 * hg * dk), lambda b, g, c: (0, 0)),
            pl.BlockSpec((1, dv), lambda b, g, c: (0, 0)),
        ],
        out_specs=pl.BlockSpec((1, chunk, hg * dv), lambda b, g, c: (b, c, g)),
        scratch_shapes=[pltpu.VMEM((dk, hg * dv), jnp.float32)],
        compiler_params=pltpu.CompilerParams(
            dimension_semantics=("parallel", "parallel", "arbitrary"),
            vmem_limit_bytes=_vmem_limit_bytes()),
    )(qkv, bias, gain)


# ----------------------------------------------------------------------------
# One-time (init-time) weight preparation: compose the Hadamard feature-map
# linears into the projection, fold the q scale, pack per head group.
# ----------------------------------------------------------------------------
def prepare_params(params, *, num_heads):
    key_dim, dim = params["wq"].shape
    value_dim = params["wv"].shape[0]
    dk = key_dim // num_heads
    dv = value_dim // num_heads
    scale = float(dk) ** -0.5

    def compose(w_proj, w_fm):
        # (x @ w_proj.T) per-head @ w_fm.T  ==  x @ composed
        wt = w_proj.T.reshape(dim, num_heads, dk)
        return jnp.einsum("dhk,jk->dhj", wt, w_fm).reshape(dim, key_dim)

    wq1 = compose(params["wq"], params["w1q"]) * scale   # scale folded here
    wq2 = compose(params["wq"], params["w2q"])
    wk1 = compose(params["wk"], params["w1k"])
    wk2 = compose(params["wk"], params["w2k"])
    wv_t = params["wv"].T

    # Two head groups (feeds both v7x TensorCores) when the packed group
    # widths are 128-lane aligned; otherwise a single group.
    n_groups = 1
    if num_heads % 2 == 0:
        hg2 = num_heads // 2
        if (hg2 * (4 * dk + dv)) % 128 == 0 and (hg2 * dv) % 128 == 0:
            n_groups = 2
    hg = num_heads // n_groups

    cols = []
    for g in range(n_groups):
        s, e = g * hg * dk, (g + 1) * hg * dk
        sv, ev = g * hg * dv, (g + 1) * hg * dv
        cols.append(jnp.concatenate(
            [wq1[:, s:e], wq2[:, s:e], wk1[:, s:e], wk2[:, s:e], wv_t[:, sv:ev]],
            axis=1))
    w_qkv = jnp.concatenate(cols, axis=1).astype(jnp.bfloat16)

    bias = jnp.concatenate([
        jnp.tile(params["b1q"] * scale, hg),
        jnp.tile(params["b2q"], hg),
        jnp.tile(params["b1k"], hg),
        jnp.tile(params["b2k"], hg),
    ]).reshape(1, 4 * hg * dk).astype(jnp.float32)

    return {
        "w_qkv": w_qkv,
        "bias": bias,
        "gain": params["g"].reshape(1, dv).astype(jnp.float32),
        "wo_t": params["wo"].T.astype(jnp.bfloat16),
        "num_heads": num_heads, "n_groups": n_groups,
        "dk": dk, "dv": dv, "value_dim": value_dim,
    }


# ----------------------------------------------------------------------------
# Module-level forward.
# ----------------------------------------------------------------------------
def linear_attention_forward(x, prep, *, eps=1e-5, chunk=None):
    B, L, D = x.shape
    num_heads, n_groups = prep["num_heads"], prep["n_groups"]
    dk, dv, value_dim = prep["dk"], prep["dv"], prep["value_dim"]

    # Fused projection -> packed [q1|q2|k1|k2|v] per head group.
    # bf16 MXU operands, x read from HBM once.
    qkv = pallas_matmul(x.reshape(B * L, D).astype(jnp.bfloat16),
                        prep["w_qkv"], out_dtype=jnp.bfloat16)
    qkv = qkv.reshape(B, L, -1)

    if chunk is None:
        chunk = 64 if max(dk, dv) <= 32 else 128
    Lp = pl.cdiv(L, chunk) * chunk
    if Lp != L:
        # Padded tail rows are causally inert for the real rows; sliced off below.
        qkv = jnp.pad(qkv, ((0, 0), (0, Lp - L), (0, 0)))

    o = chunk_linear_attn_pallas(
        qkv, prep["bias"], prep["gain"],
        num_heads=num_heads, n_groups=n_groups, dk=dk, dv=dv,
        chunk=chunk, eps=eps, out_dtype=jnp.bfloat16)
    if Lp != L:
        o = o[:, :L]

    # o already in merged 'b l (h d)' layout -> output projection.
    out = pallas_matmul(o.reshape(B * L, value_dim), prep["wo_t"],
                        out_dtype=x.dtype)
    return out.reshape(B, L, D)


# ----------------------------------------------------------------------------
# Deterministic parameter init (xavier_uniform, gain 2**-2.5; biases zero;
# RMSNorm gain ones) and a pure-JAX f32 reference for verification.
# ----------------------------------------------------------------------------
def xavier_uniform(key, shape, gain):
    fan_out, fan_in = shape
    limit = gain * (6.0 / (fan_in + fan_out)) ** 0.5
    return jax.random.uniform(key, shape, jnp.float32, -limit, limit)


def make_params(key, dim, num_heads, expand_k=1.0, expand_v=1.0):
    key_dim = int(dim * expand_k)
    value_dim = int(dim * expand_v)
    dk = key_dim // num_heads
    dv = value_dim // num_heads
    gain = 2.0 ** (-2.5)
    ks = jax.random.split(key, 8)
    return {
        "wq": xavier_uniform(ks[0], (key_dim, dim), gain),
        "wk": xavier_uniform(ks[1], (key_dim, dim), gain),
        "wv": xavier_uniform(ks[2], (value_dim, dim), gain),
        "wo": xavier_uniform(ks[3], (dim, value_dim), gain),
        "w1q": xavier_uniform(ks[4], (dk, dk), gain),
        "b1q": jnp.zeros((dk,), jnp.float32),
        "w2q": xavier_uniform(ks[5], (dk, dk), gain),
        "b2q": jnp.zeros((dk,), jnp.float32),
        "w1k": xavier_uniform(ks[6], (dk, dk), gain),
        "b1k": jnp.zeros((dk,), jnp.float32),
        "w2k": xavier_uniform(ks[7], (dk, dk), gain),
        "b2k": jnp.zeros((dk,), jnp.float32),
        "g": jnp.ones((dv,), jnp.float32),
    }


def reference_forward(x, p, num_heads, eps=1e-5):
    B, L, D = x.shape
    q = x @ p["wq"].T
    k = x @ p["wk"].T
    v = x @ p["wv"].T
    dk = q.shape[-1] // num_heads
    dv = v.shape[-1] // num_heads
    q = q.reshape(B, L, num_heads, dk).transpose(0, 2, 1, 3)
    k = k.reshape(B, L, num_heads, dk).transpose(0, 2, 1, 3)
    v = v.reshape(B, L, num_heads, dv).transpose(0, 2, 1, 3)
    q = (q @ p["w1q"].T + p["b1q"]) * (q @ p["w2q"].T + p["b2q"])
    k = (k @ p["w1k"].T + p["b1k"]) * (k @ p["w2k"].T + p["b2k"])
    scale = float(dk) ** -0.5
    a = jnp.einsum("bhtd,bhsd->bhts", q * scale, k)
    a = jnp.where(jnp.tril(jnp.ones((L, L), bool)), a, 0.0)
    o = jnp.einsum("bhts,bhsd->bhtd", a, v)
    o = o * jax.lax.rsqrt(jnp.mean(o * o, -1, keepdims=True) + eps) * p["g"]
    o = o.transpose(0, 2, 1, 3).reshape(B, L, num_heads * dv)
    return o @ p["wo"].T


if __name__ == "__main__":
    # Small but multi-chunk: L=256 with chunk=64 exercises the state carry.
    B, L, dim, num_heads = 2, 256, 64, 4     # head_qk_dim = head_v_dim = 16

    root = jax.random.PRNGKey(0)
    kx, kp = jax.random.split(root)
    x = jax.random.normal(kx, (B, L, dim), jnp.float32) * 4.0
    params = make_params(kp, dim, num_heads)
    prep = prepare_params(params, num_heads=num_heads)   # once, at init time

    out = linear_attention_forward(x, prep)
    out = jax.block_until_ready(out)

    ref = reference_forward(x, params, num_heads)
    assert out.shape == (B, L, dim)
    # bf16 MXU operands -> compare with a relative-norm tolerance vs f32 ref.
    rel = float(jnp.linalg.norm(out - ref) / (jnp.linalg.norm(ref) + 1e-9))
    assert rel < 3e-2, f"relative error too large: {rel}"
    print("KERNEL_OK")
</pallas_src>

<mosaic_0001>
module attributes {stable_mosaic.version = 11 : i64} {
  func.func @_matmul_kernel(%arg0: i32, %arg1: i32, %arg2: i32, %arg3: memref<512x64xbf16, #tpu.memory_space<vmem>>, %arg4: memref<64x320xbf16, #tpu.memory_space<vmem>>, %arg5: memref<512x320xbf16, #tpu.memory_space<vmem>>, %arg6: memref<512x320xf32, #tpu.memory_space<vmem>>) attributes {dimension_semantics = [#tpu.dimension_semantics<parallel>, #tpu.dimension_semantics<parallel>, #tpu.dimension_semantics<arbitrary>], iteration_bounds = array<i64: 1, 1, 1>, scalar_prefetch = 0 : i64, scratch_operands = 1 : i64, tpu.core_type = #tpu.core_type<tc>, window_params = [{transform_indices = @transform_0, window_bounds = array<i64: 512, 64>}, {transform_indices = @transform_1, window_bounds = array<i64: 64, 320>}, {transform_indices = @transform_2, window_bounds = array<i64: 512, 320>}]} {
    %c0_i32 = arith.constant 0 : i32
    %0 = arith.cmpi eq, %arg2, %c0_i32 : i32
    %1 = arith.extui %0 : i1 to i32
    %c0_i32_0 = arith.constant 0 : i32
    %2 = arith.cmpi ne, %1, %c0_i32_0 : i32
    scf.if %2 {
      %cst_10 = arith.constant 0.000000e+00 : f32
      %12 = vector.broadcast %cst_10 : f32 to vector<512x320xf32>
      %c0_11 = arith.constant 0 : index
      %c0_12 = arith.constant 0 : index
      %13 = vector.load %arg6[%c0_11, %c0_12] : memref<512x320xf32, #tpu.memory_space<vmem>>, vector<512x320xf32>
      tpu.vector_store %arg6[%c0_11, %c0_12], %12 {strides = array<i32>} : memref<512x320xf32, #tpu.memory_space<vmem>>, vector<512x320xf32>,
    } else {
    }
    %c0 = arith.constant 0 : index
    %c0_1 = arith.constant 0 : index
    %3 = vector.load %arg6[%c0, %c0_1] : memref<512x320xf32, #tpu.memory_space<vmem>>, vector<512x320xf32>
    %c0_2 = arith.constant 0 : index
    %c0_3 = arith.constant 0 : index
    %4 = vector.load %arg3[%c0_2, %c0_3] : memref<512x64xbf16, #tpu.memory_space<vmem>>, vector<512x64xbf16>
    %c0_4 = arith.constant 0 : index
    %c0_5 = arith.constant 0 : index
    %5 = vector.load %arg4[%c0_4, %c0_5] : memref<64x320xbf16, #tpu.memory_space<vmem>>, vector<64x320xbf16>
    %cst = arith.constant dense<0.000000e+00> : vector<512x320xf32>
    %6 = tpu.matmul %4, %5, %cst {dimension_numbers = #tpu.dot_dimension_numbers<[1], [0], [0], [1], [0, 0, 1, 1], [], []>} : vector<512x64xbf16>, vector<64x320xbf16>, vector<512x320xf32> -> vector<512x320xf32>
    %7 = arith.addf %3, %6 : vector<512x320xf32>
    %c0_6 = arith.constant 0 : index
    %c0_7 = arith.constant 0 : index
    %8 = vector.load %arg6[%c0_6, %c0_7] : memref<512x320xf32, #tpu.memory_space<vmem>>, vector<512x320xf32>
    tpu.vector_store %arg6[%c0_6, %c0_7], %7 {strides = array<i32>} : memref<512x320xf32, #tpu.memory_space<vmem>>, vector<512x320xf32>,
    %c0_i32_8 = arith.constant 0 : i32
    %9 = arith.cmpi eq, %arg2, %c0_i32_8 : i32
    %10 = arith.extui %9 : i1 to i32
    %c0_i32_9 = arith.constant 0 : i32
    %11 = arith.cmpi ne, %10, %c0_i32_9 : i32
    scf.if %11 {
      %c0_10 = arith.constant 0 : index
      %c0_11 = arith.constant 0 : index
      %12 = vector.load %arg6[%c0_10, %c0_11] : memref<512x320xf32, #tpu.memory_space<vmem>>, vector<512x320xf32>
      %13 = arith.truncf %12 : vector<512x320xf32> to vector<512x320xbf16>
      %c0_12 = arith.constant 0 : index
      %c0_13 = arith.constant 0 : index
      %14 = vector.load %arg5[%c0_12, %c0_13] : memref<512x320xbf16, #tpu.memory_space<vmem>>, vector<512x320xbf16>
      tpu.vector_store %arg5[%c0_12, %c0_13], %13 {strides = array<i32>} : memref<512x320xbf16, #tpu.memory_space<vmem>>, vector<512x320xbf16>,
    } else {
    }
    return
  }
  func.func @transform_0(%arg0: i32, %arg1: i32, %arg2: i32) -> (i32, i32) {
    %c0_i32 = arith.constant 0 : i32
    return %arg0, %arg2 : i32, i32
  }
  func.func @transform_1(%arg0: i32, %arg1: i32, %arg2: i32) -> (i32, i32) {
    %c0_i32 = arith.constant 0 : i32
    return %arg2, %arg1 : i32, i32
  }
  func.func @transform_2(%arg0: i32, %arg1: i32, %arg2: i32) -> (i32, i32) {
    %c0_i32 = arith.constant 0 : i32
    return %arg0, %arg1 : i32, i32
  }
}

</mosaic_0001>

<llo_original>
// kernel: tpu_custom_call.1
$region0: #{tpu_custom_call.1}
  #allocation0 [shape = 'u32[]', space=smem, size = 0x4, offset = 0x4, fixed_abs, tag = 'smem constant byte address 0x4 - core index']
  #allocation1 [shape = 'u32[144,128]{1,0:T(1,128)}', space=vmem, size = 0x12000, scoped, tag = 'internal scratch']
  #allocation2 [shape = 'f32[512,320]{1,0:T(8,128)}', space=vmem, size = 0xc0000, scoped, tag = 'scratch operand']
  %s0 = inlined_call_operand.vmem [shape: bf16[512,64], index: 0, kind: input, shape index: {}]
  %s1 = inlined_call_operand.vmem [shape: bf16[64,320], index: 1, kind: input, shape index: {}]
  %s2 = inlined_call_operand.vmem [shape: bf16[512,320], index: 2, kind: output, shape index: {}]
  %s3 = sld [smem:[#allocation0]]
  $region26: #{tpu_custom_call.1} parent=0
    _
  %s5 = ssub.s32 1, %s3
  %s6 = scalar_select 0, %s5, %s3
  // Predicated region
  $region2: #{tpu_custom_call.1} parent=0 // pred_check
    _
  $region3: #{tpu_custom_call.1} parent=0 // pred_check_branch
    %8 = sbr.rel (0) target = $region5
  $region4: #{tpu_custom_call.1} parent=0 // pred_region
    _
  $region5: #{tpu_custom_call.1} parent=0 // pred_fallthru
    _
  // Predicated region
  $region6: #{tpu_custom_call.1} parent=0 // pred_check
    _
  $region7: #{tpu_custom_call.1} parent=0 // pred_check_branch
    %10 = sbr.rel (0) target = $region9
  $region8: #{tpu_custom_call.1} parent=0 // pred_region
    _
  $region9: #{tpu_custom_call.1} parent=0 // pred_fallthru
    _
  %p12 = scmp.eq.s32.totalorder 0, 0
  // Predicated region
  $region10: #{tpu_custom_call.1} parent=0 // pred_check
    %p13 = pneg %p12
  $region11: #{tpu_custom_call.1} parent=0 // pred_check_branch
    %15 = sbr.rel (%p13) target = $region13
  $region12: #{tpu_custom_call.1} parent=0 // pred_region
    %16 = vst [vmem:[#allocation2] sm:$0xff] 0.0
    %17 = vst [vmem:[#allocation2 + $0x8] sm:$0xff] 0.0
    %vm18 = vcmask 523264
    %19 = vst.msk [vmem:[#allocation2 + $0x10] sm:$0xff] %vm18, 0.0
    %20 = vst [vmem:[#allocation2 + $0x18] sm:$0xff] 0.0
    %21 = vst [vmem:[#allocation2 + $0x20] sm:$0xff] 0.0
    %22 = vst.msk [vmem:[#allocation2 + $0x28] sm:$0xff] %vm18, 0.0
    %23 = vst [vmem:[#allocation2 + $0x30] sm:$0xff] 0.0
    %24 = vst [vmem:[#allocation2 + $0x38] sm:$0xff] 0.0
    %25 = vst.msk [vmem:[#allocation2 + $0x40] sm:$0xff] %vm18, 0.0
    %26 = vst [vmem:[#allocation2 + $0x48] sm:$0xff] 0.0
    %27 = vst [vmem:[#allocation2 + $0x50] sm:$0xff] 0.0
    %28 = vst.msk [vmem:[#allocation2 + $0x58] sm:$0xff] %vm18, 0.0
    %29 = vst [vmem:[#allocation2 + $0x60] sm:$0xff] 0.0
    %30 = vst [vmem:[#allocation2 + $0x68] sm:$0xff] 0.0
    %31 = vst.msk [vmem:[#allocation2 + $0x70] sm:$0xff] %vm18, 0.0
    %32 = vst [vmem:[#allocation2 + $0x78] sm:$0xff] 0.0
    %33 = vst [vmem:[#allocation2 + $0x80] sm:$0xff] 0.0
    %34 = vst.msk [vmem:[#allocation2 + $0x88] sm:$0xff] %vm18, 0.0
    %35 = vst [vmem:[#allocation2 + $0x90] sm:$0xff] 0.0
    %36 = vst [vmem:[#allocation2 + $0x98] sm:$0xff] 0.0
    %37 = vst.msk [vmem:[#allocation2 + $0xa0] sm:$0xff] %vm18, 0.0
    %38 = vst [vmem:[#allocation2 + $0xa8] sm:$0xff] 0.0
    %39 = vst [vmem:[#allocation2 + $0xb0] sm:$0xff] 0.0
    %40 = vst.msk [vmem:[#allocation2 + $0xb8] sm:$0xff] %vm18, 0.0
    %41 = vst [vmem:[#allocation2 + $0xc0] sm:$0xff] 0.0
    %42 = vst [vmem:[#allocation2 + $0xc8] sm:$0xff] 0.0
    %43 = vst.msk [vmem:[#allocation2 + $0xd0] sm:$0xff] %vm18, 0.0
    %44 = vst [vmem:[#allocation2 + $0xd8] sm:$0xff] 0.0
    %45 = vst [vmem:[#allocation2 + $0xe0] sm:$0xff] 0.0
    %46 = vst.msk [vmem:[#allocation2 + $0xe8] sm:$0xff] %vm18, 0.0
    %47 = vst [vmem:[#allocation2 + $0xf0] sm:$0xff] 0.0
    %48 = vst [vmem:[#allocation2 + $0xf8] sm:$0xff] 0.0
    %49 = vst.msk [vmem:[#allocation2 + $0x100] sm:$0xff] %vm18, 0.0
    %50 = vst [vmem:[#allocation2 + $0x108] sm:$0xff] 0.0
    %51 = vst [vmem:[#allocation2 + $0x110] sm:$0xff] 0.0
    %52 = vst.msk [vmem:[#allocation2 + $0x118] sm:$0xff] %vm18, 0.0
    %53 = vst [vmem:[#allocation2 + $0x120] sm:$0xff] 0.0
    %54 = vst [vmem:[#allocation2 + $0x128] sm:$0xff] 0.0
    %55 = vst.msk [vmem:[#allocation2 + $0x130] sm:$0xff] %vm18, 0.0
    %56 = vst [vmem:[#allocation2 + $0x138] sm:$0xff] 0.0
    %57 = vst [vmem:[#allocation2 + $0x140] sm:$0xff] 0.0
    %58 = vst.msk [vmem:[#allocation2 + $0x148] sm:$0xff] %vm18, 0.0
    %59 = vst [vmem:[#allocation2 + $0x150] sm:$0xff] 0.0
    %60 = vst [vmem:[#allocation2 + $0x158] sm:$0xff] 0.0
    %61 = vst.msk [vmem:[#allocation2 + $0x160] sm:$0xff] %vm18, 0.0
    %62 = vst [vmem:[#allocation2 + $0x168] sm:$0xff] 0.0
    %63 = vst [vmem:[#allocation2 + $0x170] sm:$0xff] 0.0
    %64 = vst.msk [vmem:[#allocation2 + $0x178] sm:$0xff] %vm18, 0.0
    %65 = vst [vmem:[#allocation2 + $0x180] sm:$0xff] 0.0
    %66 = vst [vmem:[#allocation2 + $0x188] sm:$0xff] 0.0
    %67 = vst.msk [vmem:[#allocation2 + $0x190] sm:$0xff] %vm18, 0.0
    %68 = vst [vmem:[#allocation2 + $0x198] sm:$0xff] 0.0
    %69 = vst [vmem:[#allocation2 + $0x1a0] sm:$0xff] 0.0
    %70 = vst.msk [vmem:[#allocation2 + $0x1a8] sm:$0xff] %vm18, 0.0
    %71 = vst [vmem:[#allocation2 + $0x1b0] sm:$0xff] 0.0
    %72 = vst [vmem:[#allocation2 + $0x1b8] sm:$0xff] 0.0
    %73 = vst.msk [vmem:[#allocation2 + $0x1c0] sm:$0xff] %vm18, 0.0
    %74 = vst [vmem:[#allocation2 + $0x1c8] sm:$0xff] 0.0
    %75 = vst [vmem:[#allocation2 + $0x1d0] sm:$0xff] 0.0
    %76 = vst.msk [vmem:[#allocation2 + $0x1d8] sm:$0xff] %vm18, 0.0
    %77 = vst [vmem:[#allocation2 + $0x1e0] sm:$0xff] 0.0
    %78 = vst [vmem:[#allocation2 + $0x1e8] sm:$0xff] 0.0
    %79 = vst.msk [vmem:[#allocation2 + $0x1f0] sm:$0xff] %vm18, 0.0
    %80 = vst [vmem:[#allocation2 + $0x1f8] sm:$0xff] 0.0
    %81 = vst [vmem:[#allocation2 + $0x200] sm:$0xff] 0.0
    %82 = vst.msk [vmem:[#allocation2 + $0x208] sm:$0xff] %vm18, 0.0
    %83 = vst [vmem:[#allocation2 + $0x210] sm:$0xff] 0.0
    %84 = vst [vmem:[#allocation2 + $0x218] sm:$0xff] 0.0
    %85 = vst.msk [vmem:[#allocation2 + $0x220] sm:$0xff] %vm18, 0.0
    %86 = vst [vmem:[#allocation2 + $0x228] sm:$0xff] 0.0
    %87 = vst [vmem:[#allocation2 + $0x230] sm:$0xff] 0.0
    %88 = vst.msk [vmem:[#allocation2 + $0x238] sm:$0xff] %vm18, 0.0
    %89 = vst [vmem:[#allocation2 + $0x240] sm:$0xff] 0.0
    %90 = vst [vmem:[#allocation2 + $0x248] sm:$0xff] 0.0
    %91 = vst.msk [vmem:[#allocation2 + $0x250] sm:$0xff] %vm18, 0.0
    %92 = vst [vmem:[#allocation2 + $0x258] sm:$0xff] 0.0
    %93 = vst [vmem:[#allocation2 + $0x260] sm:$0xff] 0.0
    %94 = vst.msk [vmem:[#allocation2 + $0x268] sm:$0xff] %vm18, 0.0
    %95 = vst [vmem:[#allocation2 + $0x270] sm:$0xff] 0.0
    %96 = vst [vmem:[#allocation2 + $0x278] sm:$0xff] 0.0
    %97 = vst.msk [vmem:[#allocation2 + $0x280] sm:$0xff] %vm18, 0.0
    %98 = vst [vmem:[#allocation2 + $0x288] sm:$0xff] 0.0
    %99 = vst [vmem:[#allocation2 + $0x290] sm:$0xff] 0.0
    %100 = vst.msk [vmem:[#allocation2 + $0x298] sm:$0xff] %vm18, 0.0
    %101 = vst [vmem:[#allocation2 + $0x2a0] sm:$0xff] 0.0
    %102 = vst [vmem:[#allocation2 + $0x2a8] sm:$0xff] 0.0
    %103 = vst.msk [vmem:[#allocation2 + $0x2b0] sm:$0xff] %vm18, 0.0
    %104 = vst [vmem:[#allocation2 + $0x2b8] sm:$0xff] 0.0
    %105 = vst [vmem:[#allocation2 + $0x2c0] sm:$0xff] 0.0
    %106 = vst.msk [vmem:[#allocation2 + $0x2c8] sm:$0xff] %vm18, 0.0
    %107 = vst [vmem:[#allocation2 + $0x2d0] sm:$0xff] 0.0
    %108 = vst [vmem:[#allocation2 + $0x2d8] sm:$0xff] 0.0
    %109 = vst.msk [vmem:[#allocation2 + $0x2e0] sm:$0xff] %vm18, 0.0
    %110 = vst [vmem:[#allocation2 + $0x2e8] sm:$0xff] 0.0
    %111 = vst [vmem:[#allocation2 + $0x2f0] sm:$0xff] 0.0
    %112 = vst.msk [vmem:[#allocation2 + $0x2f8] sm:$0xff] %vm18, 0.0
    %113 = vst [vmem:[#allocation2 + $0x300] sm:$0xff] 0.0
    %114 = vst [vmem:[#allocation2 + $0x308] sm:$0xff] 0.0
    %115 = vst.msk [vmem:[#allocation2 + $0x310] sm:$0xff] %vm18, 0.0
    %116 = vst [vmem:[#allocation2 + $0x318] sm:$0xff] 0.0
    %117 = vst [vmem:[#allocation2 + $0x320] sm:$0xff] 0.0
    %118 = vst.msk [vmem:[#allocation2 + $0x328] sm:$0xff] %vm18, 0.0
    %119 = vst [vmem:[#allocation2 + $0x330] sm:$0xff] 0.0
    %120 = vst [vmem:[#allocation2 + $0x338] sm:$0xff] 0.0
    %121 = vst.msk [vmem:[#allocation2 + $0x340] sm:$0xff] %vm18, 0.0
    %122 = vst [vmem:[#allocation2 + $0x348] sm:$0xff] 0.0
    %123 = vst [vmem:[#allocation2 + $0x350] sm:$0xff] 0.0
    %124 = vst.msk [vmem:[#allocation2 + $0x358] sm:$0xff] %vm18, 0.0
    %125 = vst [vmem:[#allocation2 + $0x360] sm:$0xff] 0.0
    %126 = vst [vmem:[#allocation2 + $0x368] sm:$0xff] 0.0
    %127 = vst.msk [vmem:[#allocation2 + $0x370] sm:$0xff] %vm18, 0.0
    %128 = vst [vmem:[#allocation2 + $0x378] sm:$0xff] 0.0
    %129 = vst [vmem:[#allocation2 + $0x380] sm:$0xff] 0.0
    %130 = vst.msk [vmem:[#allocation2 + $0x388] sm:$0xff] %vm18, 0.0
    %131 = vst [vmem:[#allocation2 + $0x390] sm:$0xff] 0.0
    %132 = vst [vmem:[#allocation2 + $0x398] sm:$0xff] 0.0
    %133 = vst.msk [vmem:[#allocation2 + $0x3a0] sm:$0xff] %vm18, 0.0
    %134 = vst [vmem:[#allocation2 + $0x3a8] sm:$0xff] 0.0
    %135 = vst [vmem:[#allocation2 + $0x3b0] sm:$0xff] 0.0
    %136 = vst.msk [vmem:[#allocation2 + $0x3b8] sm:$0xff] %vm18, 0.0
    %137 = vst [vmem:[#allocation2 + $0x3c0] sm:$0xff] 0.0
    %138 = vst [vmem:[#allocation2 + $0x3c8] sm:$0xff] 0.0
    %139 = vst.msk [vmem:[#allocation2 + $0x3d0] sm:$0xff] %vm18, 0.0
    %140 = vst [vmem:[#allocation2 + $0x3d8] sm:$0xff] 0.0
    %141 = vst [vmem:[#allocation2 + $0x3e0] sm:$0xff] 0.0
    %142 = vst.msk [vmem:[#allocation2 + $0x3e8] sm:$0xff] %vm18, 0.0
    %143 = vst [vmem:[#allocation2 + $0x3f0] sm:$0xff] 0.0
    %144 = vst [vmem:[#allocation2 + $0x3f8] sm:$0xff] 0.0
    %145 = vst.msk [vmem:[#allocation2 + $0x400] sm:$0xff] %vm18, 0.0
    %146 = vst [vmem:[#allocation2 + $0x408] sm:$0xff] 0.0
    %147 = vst [vmem:[#allocation2 + $0x410] sm:$0xff] 0.0
    %148 = vst.msk [vmem:[#allocation2 + $0x418] sm:$0xff] %vm18, 0.0
    %149 = vst [vmem:[#allocation2 + $0x420] sm:$0xff] 0.0
    %150 = vst [vmem:[#allocation2 + $0x428] sm:$0xff] 0.0
    %151 = vst.msk [vmem:[#allocation2 + $0x430] sm:$0xff] %vm18, 0.0
    %152 = vst [vmem:[#allocation2 + $0x438] sm:$0xff] 0.0
    %153 = vst [vmem:[#allocation2 + $0x440] sm:$0xff] 0.0
    %154 = vst.msk [vmem:[#allocation2 + $0x448] sm:$0xff] %vm18, 0.0
    %155 = vst [vmem:[#allocation2 + $0x450] sm:$0xff] 0.0
    %156 = vst [vmem:[#allocation2 + $0x458] sm:$0xff] 0.0
    %157 = vst.msk [vmem:[#allocation2 + $0x460] sm:$0xff] %vm18, 0.0
    %158 = vst [vmem:[#allocation2 + $0x468] sm:$0xff] 0.0
    %159 = vst [vmem:[#allocation2 + $0x470] sm:$0xff] 0.0
    %160 = vst.msk [vmem:[#allocation2 + $0x478] sm:$0xff] %vm18, 0.0
    %161 = vst [vmem:[#allocation2 + $0x480] sm:$0xff] 0.0
    %162 = vst [vmem:[#allocation2 + $0x488] sm:$0xff] 0.0
    %163 = vst.msk [vmem:[#allocation2 + $0x490] sm:$0xff] %vm18, 0.0
    %164 = vst [vmem:[#allocation2 + $0x498] sm:$0xff] 0.0
    %165 = vst [vmem:[#allocation2 + $0x4a0] sm:$0xff] 0.0
    %166 = vst.msk [vmem:[#allocation2 + $0x4a8] sm:$0xff] %vm18, 0.0
    %167 = vst [vmem:[#allocation2 + $0x4b0] sm:$0xff] 0.0
    %168 = vst [vmem:[#allocation2 + $0x4b8] sm:$0xff] 0.0
    %169 = vst.msk [vmem:[#allocation2 + $0x4c0] sm:$0xff] %vm18, 0.0
    %170 = vst [vmem:[#allocation2 + $0x4c8] sm:$0xff] 0.0
    %171 = vst [vmem:[#allocation2 + $0x4d0] sm:$0xff] 0.0
    %172 = vst.msk [vmem:[#allocation2 + $0x4d8] sm:$0xff] %vm18, 0.0
    %173 = vst [vmem:[#allocation2 + $0x4e0] sm:$0xff] 0.0
    %174 = vst [vmem:[#allocation2 + $0x4e8] sm:$0xff] 0.0
    %175 = vst.msk [vmem:[#allocation2 + $0x4f0] sm:$0xff] %vm18, 0.0
    %176 = vst [vmem:[#allocation2 + $0x4f8] sm:$0xff] 0.0
    %177 = vst [vmem:[#allocation2 + $0x500] sm:$0xff] 0.0
    %178 = vst.msk [vmem:[#allocation2 + $0x508] sm:$0xff] %vm18, 0.0
    %179 = vst [vmem:[#allocation2 + $0x510] sm:$0xff] 0.0
    %180 = vst [vmem:[#allocation2 + $0x518] sm:$0xff] 0.0
    %181 = vst.msk [vmem:[#allocation2 + $0x520] sm:$0xff] %vm18, 0.0
    %182 = vst [vmem:[#allocation2 + $0x528] sm:$0xff] 0.0
    %183 = vst [vmem:[#allocation2 + $0x530] sm:$0xff] 0.0
    %184 = vst.msk [vmem:[#allocation2 + $0x538] sm:$0xff] %vm18, 0.0
    %185 = vst [vmem:[#allocation2 + $0x540] sm:$0xff] 0.0
    %186 = vst [vmem:[#allocation2 + $0x548] sm:$0xff] 0.0
    %187 = vst.msk [vmem:[#allocation2 + $0x550] sm:$0xff] %vm18, 0.0
    %188 = vst [vmem:[#allocation2 + $0x558] sm:$0xff] 0.0
    %189 = vst [vmem:[#allocation2 + $0x560] sm:$0xff] 0.0
    %190 = vst.msk [vmem:[#allocation2 + $0x568] sm:$0xff] %vm18, 0.0
    %191 = vst [vmem:[#allocation2 + $0x570] sm:$0xff] 0.0
    %192 = vst [vmem:[#allocation2 + $0x578] sm:$0xff] 0.0
    %193 = vst.msk [vmem:[#allocation2 + $0x580] sm:$0xff] %vm18, 0.0
    %194 = vst [vmem:[#allocation2 + $0x588] sm:$0xff] 0.0
    %195 = vst [vmem:[#allocation2 + $0x590] sm:$0xff] 0.0
    %196 = vst.msk [vmem:[#allocation2 + $0x598] sm:$0xff] %vm18, 0.0
    %197 = vst [vmem:[#allocation2 + $0x5a0] sm:$0xff] 0.0
    %198 = vst [vmem:[#allocation2 + $0x5a8] sm:$0xff] 0.0
    %199 = vst.msk [vmem:[#allocation2 + $0x5b0] sm:$0xff] %vm18, 0.0
    %200 = vst [vmem:[#allocation2 + $0x5b8] sm:$0xff] 0.0
    %201 = vst [vmem:[#allocation2 + $0x5c0] sm:$0xff] 0.0
    %202 = vst.msk [vmem:[#allocation2 + $0x5c8] sm:$0xff] %vm18, 0.0
    %203 = vst [vmem:[#allocation2 + $0x5d0] sm:$0xff] 0.0
    %204 = vst [vmem:[#allocation2 + $0x5d8] sm:$0xff] 0.0
    %205 = vst.msk [vmem:[#allocation2 + $0x5e0] sm:$0xff] %vm18, 0.0
    %206 = vst [vmem:[#allocation2 + $0x5e8] sm:$0xff] 0.0
    %207 = vst [vmem:[#allocation2 + $0x5f0] sm:$0xff] 0.0
    %208 = vst.msk [vmem:[#allocation2 + $0x5f8] sm:$0xff] %vm18, 0.0
  $region13: #{tpu_custom_call.1} parent=0 // pred_fallthru
    _
  %v209 = vld [vmem:[#allocation2] sm:$0xff]
  %v210 = vld [vmem:[#allocation2 + $0x8] sm:$0xff]
  %v211 = vld [vmem:[#allocation2 + $0x10] sm:$0xff]
  %v212 = vld [vmem:[#allocation2 + $0x18] sm:$0xff]
  %v213 = vld [vmem:[#allocation2 + $0x20] sm:$0xff]
  %v214 = vld [vmem:[#allocation2 + $0x28] sm:$0xff]
  %v215 = vld [vmem:[#allocation2 + $0x30] sm:$0xff]
  %v216 = vld [vmem:[#allocation2 + $0x38] sm:$0xff]
  %v217 = vld [vmem:[#allocation2 + $0x40] sm:$0xff]
  %v218 = vld [vmem:[#allocation2 + $0x48] sm:$0xff]
  %v219 = vld [vmem:[#allocation2 + $0x50] sm:$0xff]
  %v220 = vld [vmem:[#allocation2 + $0x58] sm:$0xff]
  %v221 = vld [vmem:[#allocation2 + $0x60] sm:$0xff]
  %v222 = vld [vmem:[#allocation2 + $0x68] sm:$0xff]
  %v223 = vld [vmem:[#allocation2 + $0x70] sm:$0xff]
  %v224 = vld [vmem:[#allocation2 + $0x78] sm:$0xff]
  %v225 = vld [vmem:[#allocation2 + $0x80] sm:$0xff]
  %v226 = vld [vmem:[#allocation2 + $0x88] sm:$0xff]
  %v227 = vld [vmem:[#allocation2 + $0x90] sm:$0xff]
  %v228 = vld [vmem:[#allocation2 + $0x98] sm:$0xff]
  %v229 = vld [vmem:[#allocation2 + $0xa0] sm:$0xff]
  %v230 = vld [vmem:[#allocation2 + $0xa8] sm:$0xff]
  %v231 = vld [vmem:[#allocation2 + $0xb0] sm:$0xff]
  %v232 = vld [vmem:[#allocation2 + $0xb8] sm:$0xff]
  %v233 = vld [vmem:[#allocation2 + $0xc0] sm:$0xff]
  %v234 = vld [vmem:[#allocation2 + $0xc8] sm:$0xff]
  %v235 = vld [vmem:[#allocation2 + $0xd0] sm:$0xff]
  %v236 = vld [vmem:[#allocation2 + $0xd8] sm:$0xff]
  %v237 = vld [vmem:[#allocation2 + $0xe0] sm:$0xff]
  %v238 = vld [vmem:[#allocation2 + $0xe8] sm:$0xff]
  %v239 = vld [vmem:[#allocation2 + $0xf0] sm:$0xff]
  %v240 = vld [vmem:[#allocation2 + $0xf8] sm:$0xff]
  %v241 = vld [vmem:[#allocation2 + $0x100] sm:$0xff]
  %v242 = vld [vmem:[#allocation2 + $0x108] sm:$0xff]
  %v243 = vld [vmem:[#allocation2 + $0x110] sm:$0xff]
  %v244 = vld [vmem:[#allocation2 + $0x118] sm:$0xff]
  %v245 = vld [vmem:[#allocation2 + $0x120] sm:$0xff]
  %v246 = vld [vmem:[#allocation2 + $0x128] sm:$0xff]
  %v247 = vld [vmem:[#allocation2 + $0x130] sm:$0xff]
  %v248 = vld [vmem:[#allocation2 + $0x138] sm:$0xff]
  %v249 = vld [vmem:[#allocation2 + $0x140] sm:$0xff]
  %v250 = vld [vmem:[#allocation2 + $0x148] sm:$0xff]
  %v251 = vld [vmem:[#allocation2 + $0x150] sm:$0xff]
  %v252 = vld [vmem:[#allocation2 + $0x158] sm:$0xff]
  %v253 = vld [vmem:[#allocation2 + $0x160] sm:$0xff]
  %v254 = vld [vmem:[#allocation2 + $0x168] sm:$0xff]
  %v255 = vld [vmem:[#allocation2 + $0x170] sm:$0xff]
  %v256 = vld [vmem:[#allocation2 + $0x178] sm:$0xff]
  %v257 = vld [vmem:[#allocation2 + $0x180] sm:$0xff]
  %v258 = vld [vmem:[#allocation2 + $0x188] sm:$0xff]
  %v259 = vld [vmem:[#allocation2 + $0x190] sm:$0xff]
  %v260 = vld [vmem:[#allocation2 + $0x198] sm:$0xff]
  %v261 = vld [vmem:[#allocation2 + $0x1a0] sm:$0xff]
  %v262 = vld [vmem:[#allocation2 + $0x1a8] sm:$0xff]
  %v263 = vld [vmem:[#allocation2 + $0x1b0] sm:$0xff]
  %v264 = vld [vmem:[#allocation2 + $0x1b8] sm:$0xff]
  %v265 = vld [vmem:[#allocation2 + $0x1c0] sm:$0xff]
  %v266 = vld [vmem:[#allocation2 + $0x1c8] sm:$0xff]
  %v267 = vld [vmem:[#allocation2 + $0x1d0] sm:$0xff]
  %v268 = vld [vmem:[#allocation2 + $0x1d8] sm:$0xff]
  %v269 = vld [vmem:[#allocation2 + $0x1e0] sm:$0xff]
  %v270 = vld [vmem:[#allocation2 + $0x1e8] sm:$0xff]
  %v271 = vld [vmem:[#allocation2 + $0x1f0] sm:$0xff]
  %v272 = vld [vmem:[#allocation2 + $0x1f8] sm:$0xff]
  %v273 = vld [vmem:[#allocation2 + $0x200] sm:$0xff]
  %v274 = vld [vmem:[#allocation2 + $0x208] sm:$0xff]
  %v275 = vld [vmem:[#allocation2 + $0x210] sm:$0xff]
  %v276 = vld [vmem:[#allocation2 + $0x218] sm:$0xff]
  %v277 = vld [vmem:[#allocation2 + $0x220] sm:$0xff]
  %v278 = vld [vmem:[#allocation2 + $0x228] sm:$0xff]
  %v279 = vld [vmem:[#allocation2 + $0x230] sm:$0xff]
  %v280 = vld [vmem:[#allocation2 + $0x238] sm:$0xff]
  %v281 = vld [vmem:[#allocation2 + $0x240] sm:$0xff]
  %v282 = vld [vmem:[#allocation2 + $0x248] sm:$0xff]
  %v283 = vld [vmem:[#allocation2 + $0x250] sm:$0xff]
  %v284 = vld [vmem:[#allocation2 + $0x258] sm:$0xff]
  %v285 = vld [vmem:[#allocation2 + $0x260] sm:$0xff]
  %v286 = vld [vmem:[#allocation2 + $0x268] sm:$0xff]
  %v287 = vld [vmem:[#allocation2 + $0x270] sm:$0xff]
  %v288 = vld [vmem:[#allocation2 + $0x278] sm:$0xff]
  %v289 = vld [vmem:[#allocation2 + $0x280] sm:$0xff]
  %v290 = vld [vmem:[#allocation2 + $0x288] sm:$0xff]
  %v291 = vld [vmem:[#allocation2 + $0x290] sm:$0xff]
  %v292 = vld [vmem:[#allocation2 + $0x298] sm:$0xff]
  %v293 = vld [vmem:[#allocation2 + $0x2a0] sm:$0xff]
  %v294 = vld [vmem:[#allocation2 + $0x2a8] sm:$0xff]
  %v295 = vld [vmem:[#allocation2 + $0x2b0] sm:$0xff]
  %v296 = vld [vmem:[#allocation2 + $0x2b8] sm:$0xff]
  %v297 = vld [vmem:[#allocation2 + $0x2c0] sm:$0xff]
  %v298 = vld [vmem:[#allocation2 + $0x2c8] sm:$0xff]
  %v299 = vld [vmem:[#allocation2 + $0x2d0] sm:$0xff]
  %v300 = vld [vmem:[#allocation2 + $0x2d8] sm:$0xff]
  %v301 = vld [vmem:[#allocation2 + $0x2e0] sm:$0xff]
  %v302 = vld [vmem:[#allocation2 + $0x2e8] sm:$0xff]
  %v303 = vld [vmem:[#allocation2 + $0x2f0] sm:$0xff]
  %v304 = vld [vmem:[#allocation2 + $0x2f8] sm:$0xff]
  %v305 = vld [vmem:[#allocation2 + $0x300] sm:$0xff]
  %v306 = vld [vmem:[#allocation2 + $0x308] sm:$0xff]
  %v307 = vld [vmem:[#allocation2 + $0x310] sm:$0xff]
  %v308 = vld [vmem:[#allocation2 + $0x318] sm:$0xff]
  %v309 = vld [vmem:[#allocation2 + $0x320] sm:$0xff]
  %v310 = vld [vmem:[#allocation2 + $0x328] sm:$0xff]
  %v311 = vld [vmem:[#allocation2 + $0x330] sm:$0xff]
  %v312 = vld [vmem:[#allocation2 + $0x338] sm:$0xff]
  %v313 = vld [vmem:[#allocation2 + $0x340] sm:$0xff]
  %v314 = vld [vmem:[#allocation2 + $0x348] sm:$0xff]
  %v315 = vld [vmem:[#allocation2 + $0x350] sm:$0xff]
  %v316 = vld [vmem:[#allocation2 + $0x358] sm:$0xff]
  %v317 = vld [vmem:[#allocation2 + $0x360] sm:$0xff]
  %v318 = vld [vmem:[#allocation2 + $0x368] sm:$0xff]
  %v319 = vld [vmem:[#allocation2 + $0x370] sm:$0xff]
  %v320 = vld [vmem:[#allocation2 + $0x378] sm:$0xff]
  %v321 = vld [vmem:[#allocation2 + $0x380] sm:$0xff]
  %v322 = vld [vmem:[#allocation2 + $0x388] sm:$0xff]
  %v323 = vld [vmem:[#allocation2 + $0x390] sm:$0xff]
  %v324 = vld [vmem:[#allocation2 + $0x398] sm:$0xff]
  %v325 = vld [vmem:[#allocation2 + $0x3a0] sm:$0xff]
  %v326 = vld [vmem:[#allocation2 + $0x3a8] sm:$0xff]
  %v327 = vld [vmem:[#allocation2 + $0x3b0] sm:$0xff]
  %v328 = vld [vmem:[#allocation2 + $0x3b8] sm:$0xff]
  %v329 = vld [vmem:[#allocation2 + $0x3c0] sm:$0xff]
  %v330 = vld [vmem:[#allocation2 + $0x3c8] sm:$0xff]
  %v331 = vld [vmem:[#allocation2 + $0x3d0] sm:$0xff]
  %v332 = vld [vmem:[#allocation2 + $0x3d8] sm:$0xff]
  %v333 = vld [vmem:[#allocation2 + $0x3e0] sm:$0xff]
  %v334 = vld [vmem:[#allocation2 + $0x3e8] sm:$0xff]
  %v335 = vld [vmem:[#allocation2 + $0x3f0] sm:$0xff]
  %v336 = vld [vmem:[#allocation2 + $0x3f8] sm:$0xff]
  %v337 = vld [vmem:[#allocation2 + $0x400] sm:$0xff]
  %v338 = vld [vmem:[#allocation2 + $0x408] sm:$0xff]
  %v339 = vld [vmem:[#allocation2 + $0x410] sm:$0xff]
  %v340 = vld [vmem:[#allocation2 + $0x418] sm:$0xff]
  %v341 = vld [vmem:[#allocation2 + $0x420] sm:$0xff]
  %v342 = vld [vmem:[#allocation2 + $0x428] sm:$0xff]
  %v343 = vld [vmem:[#allocation2 + $0x430] sm:$0xff]
  %v344 = vld [vmem:[#allocation2 + $0x438] sm:$0xff]
  %v345 = vld [vmem:[#allocation2 + $0x440] sm:$0xff]
  %v346 = vld [vmem:[#allocation2 + $0x448] sm:$0xff]
  %v347 = vld [vmem:[#allocation2 + $0x450] sm:$0xff]
  %v348 = vld [vmem:[#allocation2 + $0x458] sm:$0xff]
  %v349 = vld [vmem:[#allocation2 + $0x460] sm:$0xff]
  %v350 = vld [vmem:[#allocation2 + $0x468] sm:$0xff]
  %v351 = vld [vmem:[#allocation2 + $0x470] sm:$0xff]
  %v352 = vld [vmem:[#allocation2 + $0x478] sm:$0xff]
  %v353 = vld [vmem:[#allocation2 + $0x480] sm:$0xff]
  %v354 = vld [vmem:[#allocation2 + $0x488] sm:$0xff]
  %v355 = vld [vmem:[#allocation2 + $0x490] sm:$0xff]
  %v356 = vld [vmem:[#allocation2 + $0x498] sm:$0xff]
  %v357 = vld [vmem:[#allocation2 + $0x4a0] sm:$0xff]
  %v358 = vld [vmem:[#allocation2 + $0x4a8] sm:$0xff]
  %v359 = vld [vmem:[#allocation2 + $0x4b0] sm:$0xff]
  %v360 = vld [vmem:[#allocation2 + $0x4b8] sm:$0xff]
  %v361 = vld [vmem:[#allocation2 + $0x4c0] sm:$0xff]
  %v362 = vld [vmem:[#allocation2 + $0x4c8] sm:$0xff]
  %v363 = vld [vmem:[#allocation2 + $0x4d0] sm:$0xff]
  %v364 = vld [vmem:[#allocation2 + $0x4d8] sm:$0xff]
  %v365 = vld [vmem:[#allocation2 + $0x4e0] sm:$0xff]
  %v366 = vld [vmem:[#allocation2 + $0x4e8] sm:$0xff]
  %v367 = vld [vmem:[#allocation2 + $0x4f0] sm:$0xff]
  %v368 = vld [vmem:[#allocation2 + $0x4f8] sm:$0xff]
  %v369 = vld [vmem:[#allocation2 + $0x500] sm:$0xff]
  %v370 = vld [vmem:[#allocation2 + $0x508] sm:$0xff]
  %v371 = vld [vmem:[#allocation2 + $0x510] sm:$0xff]
  %v372 = vld [vmem:[#allocation2 + $0x518] sm:$0xff]
  %v373 = vld [vmem:[#allocation2 + $0x520] sm:$0xff]
  %v374 = vld [vmem:[#allocation2 + $0x528] sm:$0xff]
  %v375 = vld [vmem:[#allocation2 + $0x530] sm:$0xff]
  %v376 = vld [vmem:[#allocation2 + $0x538] sm:$0xff]
  %v377 = vld [vmem:[#allocation2 + $0x540] sm:$0xff]
  %v378 = vld [vmem:[#allocation2 + $0x548] sm:$0xff]
  %v379 = vld [vmem:[#allocation2 + $0x550] sm:$0xff]
  %v380 = vld [vmem:[#allocation2 + $0x558] sm:$0xff]
  %v381 = vld [vmem:[#allocation2 + $0x560] sm:$0xff]
  %v382 = vld [vmem:[#allocation2 + $0x568] sm:$0xff]
  %v383 = vld [vmem:[#allocation2 + $0x570] sm:$0xff]
  %v384 = vld [vmem:[#allocation2 + $0x578] sm:$0xff]
  %v385 = vld [vmem:[#allocation2 + $0x580] sm:$0xff]
  %v386 = vld [vmem:[#allocation2 + $0x588] sm:$0xff]
  %v387 = vld [vmem:[#allocation2 + $0x590] sm:$0xff]
  %v388 = vld [vmem:[#allocation2 + $0x598] sm:$0xff]
  %v389 = vld [vmem:[#allocation2 + $0x5a0] sm:$0xff]
  %v390 = vld [vmem:[#allocation2 + $0x5a8] sm:$0xff]
  %v391 = vld [vmem:[#allocation2 + $0x5b0] sm:$0xff]
  %v392 = vld [vmem:[#allocation2 + $0x5b8] sm:$0xff]
  %v393 = vld [vmem:[#allocation2 + $0x5c0] sm:$0xff]
  %v394 = vld [vmem:[#allocation2 + $0x5c8] sm:$0xff]
  %v395 = vld [vmem:[#allocation2 + $0x5d0] sm:$0xff]
  %v396 = vld [vmem:[#allocation2 + $0x5d8] sm:$0xff]
  %v397 = vld [vmem:[#allocation2 + $0x5e0] sm:$0xff]
  %v398 = vld [vmem:[#allocation2 + $0x5e8] sm:$0xff]
  %v399 = vld [vmem:[#allocation2 + $0x5f0] sm:$0xff]
  %v400 = vld [vmem:[#allocation2 + $0x5f8] sm:$0xff]
  %v401 = vld [vmem:[%s0] sm:$0xf]
  %v402 = vld [vmem:[%s0 + $0x4] sm:$0xf]
  %v403 = vld [vmem:[%s0 + $0x8] sm:$0xf]
  %v404 = vld [vmem:[%s0 + $0xc] sm:$0xf]
  %v405 = vld [vmem:[%s0 + $0x10] sm:$0xf]
  %v406 = vld [vmem:[%s0 + $0x14] sm:$0xf]
  %v407 = vld [vmem:[%s0 + $0x18] sm:$0xf]
  %v408 = vld [vmem:[%s0 + $0x1c] sm:$0xf]
  %v409 = vld [vmem:[%s0 + $0x20] sm:$0xf]
  %v410 = vld [vmem:[%s0 + $0x24] sm:$0xf]
  %v411 = vld [vmem:[%s0 + $0x28] sm:$0xf]
  %v412 = vld [vmem:[%s0 + $0x2c] sm:$0xf]
  %v413 = vld [vmem:[%s0 + $0x30] sm:$0xf]
  %v414 = vld [vmem:[%s0 + $0x34] sm:$0xf]
  %v415 = vld [vmem:[%s0 + $0x38] sm:$0xf]
  %v416 = vld [vmem:[%s0 + $0x3c] sm:$0xf]
  %v417 = vld [vmem:[%s0 + $0x40] sm:$0xf]
  %v418 = vld [vmem:[%s0 + $0x44] sm:$0xf]
  %v419 = vld [vmem:[%s0 + $0x48] sm:$0xf]
  %v420 = vld [vmem:[%s0 + $0x4c] sm:$0xf]
  %v421 = vld [vmem:[%s0 + $0x50] sm:$0xf]
  %v422 = vld [vmem:[%s0 + $0x54] sm:$0xf]
  %v423 = vld [vmem:[%s0 + $0x58] sm:$0xf]
  %v424 = vld [vmem:[%s0 + $0x5c] sm:$0xf]
  %v425 = vld [vmem:[%s0 + $0x60] sm:$0xf]
  %v426 = vld [vmem:[%s0 + $0x64] sm:$0xf]
  %v427 = vld [vmem:[%s0 + $0x68] sm:$0xf]
  %v428 = vld [vmem:[%s0 + $0x6c] sm:$0xf]
  %v429 = vld [vmem:[%s0 + $0x70] sm:$0xf]
  %v430 = vld [vmem:[%s0 + $0x74] sm:$0xf]
  %v431 = vld [vmem:[%s0 + $0x78] sm:$0xf]
  %v432 = vld [vmem:[%s0 + $0x7c] sm:$0xf]
  %v433 = vld [vmem:[%s0 + $0x80] sm:$0xf]
  %v434 = vld [vmem:[%s0 + $0x84] sm:$0xf]
  %v435 = vld [vmem:[%s0 + $0x88] sm:$0xf]
  %v436 = vld [vmem:[%s0 + $0x8c] sm:$0xf]
  %v437 = vld [vmem:[%s0 + $0x90] sm:$0xf]
  %v438 = vld [vmem:[%s0 + $0x94] sm:$0xf]
  %v439 = vld [vmem:[%s0 + $0x98] sm:$0xf]
  %v440 = vld [vmem:[%s0 + $0x9c] sm:$0xf]
  %v441 = vld [vmem:[%s0 + $0xa0] sm:$0xf]
  %v442 = vld [vmem:[%s0 + $0xa4] sm:$0xf]
  %v443 = vld [vmem:[%s0 + $0xa8] sm:$0xf]
  %v444 = vld [vmem:[%s0 + $0xac] sm:$0xf]
  %v445 = vld [vmem:[%s0 + $0xb0] sm:$0xf]
  %v446 = vld [vmem:[%s0 + $0xb4] sm:$0xf]
  %v447 = vld [vmem:[%s0 + $0xb8] sm:$0xf]
  %v448 = vld [vmem:[%s0 + $0xbc] sm:$0xf]
  %v449 = vld [vmem:[%s0 + $0xc0] sm:$0xf]
  %v450 = vld [vmem:[%s0 + $0xc4] sm:$0xf]
  %v451 = vld [vmem:[%s0 + $0xc8] sm:$0xf]
  %v452 = vld [vmem:[%s0 + $0xcc] sm:$0xf]
  %v453 = vld [vmem:[%s0 + $0xd0] sm:$0xf]
  %v454 = vld [vmem:[%s0 + $0xd4] sm:$0xf]
  %v455 = vld [vmem:[%s0 + $0xd8] sm:$0xf]
  %v456 = vld [vmem:[%s0 + $0xdc] sm:$0xf]
  %v457 = vld [vmem:[%s0 + $0xe0] sm:$0xf]
  %v458 = vld [vmem:[%s0 + $0xe4] sm:$0xf]
  %v459 = vld [vmem:[%s0 + $0xe8] sm:$0xf]
  %v460 = vld [vmem:[%s0 + $0xec] sm:$0xf]
  %v461 = vld [vmem:[%s0 + $0xf0] sm:$0xf]
  %v462 = vld [vmem:[%s0 + $0xf4] sm:$0xf]
  %v463 = vld [vmem:[%s0 + $0xf8] sm:$0xf]
  %v464 = vld [vmem:[%s0 + $0xfc] sm:$0xf]
  %v465 = vld [vmem:[%s1] sm:$0xff]
  %v466 = vld [vmem:[%s1 + $0x8] sm:$0xf]
  %v467 = vld [vmem:[%s1 + $0xc] sm:$0xff]
  %v468 = vld [vmem:[%s1 + $0x14] sm:$0xf]
  %v469 = vld [vmem:[%s1 + $0x18] sm:$0xff]
  %v470 = vld [vmem:[%s1 + $0x20] sm:$0xf]
  %v471 = vld [vmem:[%s1 + $0x24] sm:$0xff]
  %v472 = vld [vmem:[%s1 + $0x2c] sm:$0xf]
  %v473 = vld [vmem:[%s1 + $0x30] sm:$0xff]
  %v474 = vld [vmem:[%s1 + $0x38] sm:$0xf]
  %v475 = vld [vmem:[%s1 + $0x3c] sm:$0xff]
  %v476 = vld [vmem:[%s1 + $0x44] sm:$0xf]
  %v477 = vld [vmem:[%s1 + $0x48] sm:$0xff]
  %v478 = vld [vmem:[%s1 + $0x50] sm:$0xf]
  %v479 = vld [vmem:[%s1 + $0x54] sm:$0xff]
  %v480 = vld [vmem:[%s1 + $0x5c] sm:$0xf]
  %v545 = vunpack.c.l.b16 %v401
  %v546 = vunpack.c.l.b16 %v402
  %v547 = vunpack.c.l.b16 %v403
  %v548 = vunpack.c.l.b16 %v404
  %v549 = vunpack.c.l.b16 %v405
  %v550 = vunpack.c.l.b16 %v406
  %v551 = vunpack.c.l.b16 %v407
  %v552 = vunpack.c.l.b16 %v408
  %v553 = vunpack.c.l.b16 %v409
  %v554 = vunpack.c.l.b16 %v410
  %v555 = vunpack.c.l.b16 %v411
  %v556 = vunpack.c.l.b16 %v412
  %v557 = vunpack.c.l.b16 %v413
  %v558 = vunpack.c.l.b16 %v414
  %v559 = vunpack.c.l.b16 %v415
  %v560 = vunpack.c.l.b16 %v416
  %v561 = vunpack.c.l.b16 %v417
  %v562 = vunpack.c.l.b16 %v418
  %v563 = vunpack.c.l.b16 %v419
  %v564 = vunpack.c.l.b16 %v420
  %v565 = vunpack.c.l.b16 %v421
  %v566 = vunpack.c.l.b16 %v422
  %v567 = vunpack.c.l.b16 %v423
  %v568 = vunpack.c.l.b16 %v424
  %v569 = vunpack.c.l.b16 %v425
  %v570 = vunpack.c.l.b16 %v426
  %v571 = vunpack.c.l.b16 %v427
  %v572 = vunpack.c.l.b16 %v428
  %v573 = vunpack.c.l.b16 %v429
  %v574 = vunpack.c.l.b16 %v430
  %v575 = vunpack.c.l.b16 %v431
  %v576 = vunpack.c.l.b16 %v432
  %v577 = vunpack.c.l.b16 %v433
  %v578 = vunpack.c.l.b16 %v434
  %v579 = vunpack.c.l.b16 %v435
  %v580 = vunpack.c.l.b16 %v436
  %v581 = vunpack.c.l.b16 %v437
  %v582 = vunpack.c.l.b16 %v438
  %v583 = vunpack.c.l.b16 %v439
  %v584 = vunpack.c.l.b16 %v440
  %v585 = vunpack.c.l.b16 %v441
  %v586 = vunpack.c.l.b16 %v442
  %v587 = vunpack.c.l.b16 %v443
  %v588 = vunpack.c.l.b16 %v444
  %v589 = vunpack.c.l.b16 %v445
  %v590 = vunpack.c.l.b16 %v446
  %v591 = vunpack.c.l.b16 %v447
  %v592 = vunpack.c.l.b16 %v448
  %v593 = vunpack.c.l.b16 %v449
  %v594 = vunpack.c.l.b16 %v450
  %v595 = vunpack.c.l.b16 %v451
  %v596 = vunpack.c.l.b16 %v452
  %v597 = vunpack.c.l.b16 %v453
  %v598 = vunpack.c.l.b16 %v454
  %v599 = vunpack.c.l.b16 %v455
  %v600 = vunpack.c.l.b16 %v456
  %v601 = vunpack.c.l.b16 %v457
  %v602 = vunpack.c.l.b16 %v458
  %v603 = vunpack.c.l.b16 %v459
  %v604 = vunpack.c.l.b16 %v460
  %v605 = vunpack.c.l.b16 %v461
  %v606 = vunpack.c.l.b16 %v462
  %v607 = vunpack.c.l.b16 %v463
  %v608 = vunpack.c.l.b16 %v464
  %v609 = vpack.c.b16 %v546, %v545
  %v610 = vpack.c.b16 %v548, %v547
  %v611 = vpack.c.b16 %v550, %v549
  %v612 = vpack.c.b16 %v552, %v551
  %v613 = vpack.c.b16 %v554, %v553
  %v614 = vpack.c.b16 %v556, %v555
  %v615 = vpack.c.b16 %v558, %v557
  %v616 = vpack.c.b16 %v560, %v559
  %v617 = vpack.c.b16 %v562, %v561
  %v618 = vpack.c.b16 %v564, %v563
  %v619 = vpack.c.b16 %v566, %v565
  %v620 = vpack.c.b16 %v568, %v567
  %v621 = vpack.c.b16 %v570, %v569
  %v622 = vpack.c.b16 %v572, %v571
  %v623 = vpack.c.b16 %v574, %v573
  %v624 = vpack.c.b16 %v576, %v575
  %v625 = vpack.c.b16 %v578, %v577
  %v626 = vpack.c.b16 %v580, %v579
  %v627 = vpack.c.b16 %v582, %v581
  %v628 = vpack.c.b16 %v584, %v583
  %v629 = vpack.c.b16 %v586, %v585
  %v630 = vpack.c.b16 %v588, %v587
  %v631 = vpack.c.b16 %v590, %v589
  %v632 = vpack.c.b16 %v592, %v591
  %v633 = vpack.c.b16 %v594, %v593
  %v634 = vpack.c.b16 %v596, %v595
  %v635 = vpack.c.b16 %v598, %v597
  %v636 = vpack.c.b16 %v600, %v599
  %v637 = vpack.c.b16 %v602, %v601
  %v638 = vpack.c.b16 %v604, %v603
  %v639 = vpack.c.b16 %v606, %v605
  %v640 = vpack.c.b16 %v608, %v607
  %v657 = vunpack.c.l.b16 %v465
  %v658 = vunpack.c.h.b16 %v465
  %v659 = vunpack.c.l.b16 %v466
  %v660 = vunpack.c.l.b16 %v467
  %v661 = vunpack.c.h.b16 %v467
  %v662 = vunpack.c.l.b16 %v468
  %v663 = vunpack.c.l.b16 %v469
  %v664 = vunpack.c.h.b16 %v469
  %v665 = vunpack.c.l.b16 %v470
  %v666 = vunpack.c.l.b16 %v471
  %v667 = vunpack.c.h.b16 %v471
  %v668 = vunpack.c.l.b16 %v472
  %v669 = vunpack.c.l.b16 %v473
  %v670 = vunpack.c.h.b16 %v473
  %v671 = vunpack.c.l.b16 %v474
  %v672 = vunpack.c.l.b16 %v475
  %v673 = vunpack.c.h.b16 %v475
  %v674 = vunpack.c.l.b16 %v476
  %v675 = vunpack.c.l.b16 %v477
  %v676 = vunpack.c.h.b16 %v477
  %v677 = vunpack.c.l.b16 %v478
  %v678 = vunpack.c.l.b16 %v479
  %v679 = vunpack.c.h.b16 %v479
  %v680 = vunpack.c.l.b16 %v480
  %v681 = vpack.c.b16 %v660, %v657
  %v682 = vpack.c.b16 %v661, %v658
  %v683 = vpack.c.b16 %v662, %v659
  %v684 = vpack.c.b16 %v666, %v663
  %v685 = vpack.c.b16 %v667, %v664
  %v686 = vpack.c.b16 %v668, %v665
  %v687 = vpack.c.b16 %v672, %v669
  %v688 = vpack.c.b16 %v673, %v670
  %v689 = vpack.c.b16 %v674, %v671
  %v690 = vpack.c.b16 %v678, %v675
  %v691 = vpack.c.b16 %v679, %v676
  %v692 = vpack.c.b16 %v680, %v677
  %vm705 = vcmask 523264
  %v707 = vsel %vm705, %v609, 0
  %v710 = vsel %vm705, %v610, 0
  %v713 = vsel %vm705, %v611, 0
  %v716 = vsel %vm705, %v612, 0
  %v719 = vsel %vm705, %v613, 0
  %v722 = vsel %vm705, %v614, 0
  %v725 = vsel %vm705, %v615, 0
  %v728 = vsel %vm705, %v616, 0
  %v731 = vsel %vm705, %v617, 0
  %v734 = vsel %vm705, %v618, 0
  %v737 = vsel %vm705, %v619, 0
  %v740 = vsel %vm705, %v620, 0
  %v743 = vsel %vm705, %v621, 0
  %v746 = vsel %vm705, %v622, 0
  %v749 = vsel %vm705, %v623, 0
  %v752 = vsel %vm705, %v624, 0
  %v755 = vsel %vm705, %v625, 0
  %v758 = vsel %vm705, %v626, 0
  %v761 = vsel %vm705, %v627, 0
  %v764 = vsel %vm705, %v628, 0
  %v767 = vsel %vm705, %v629, 0
  %v770 = vsel %vm705, %v630, 0
  %v773 = vsel %vm705, %v631, 0
  %v776 = vsel %vm705, %v632, 0
  %v779 = vsel %vm705, %v633, 0
  %v782 = vsel %vm705, %v634, 0
  %v785 = vsel %vm705, %v635, 0
  %v788 = vsel %vm705, %v636, 0
  %v791 = vsel %vm705, %v637, 0
  %v794 = vsel %vm705, %v638, 0
  %v797 = vsel %vm705, %v639, 0
  %v800 = vsel %vm705, %v640, 0
  %802 = vmatprep.subr.bf16.mxu0 0
  %803 = vmatpush1.bf16.msra.mxu0 0
  %804 = vmatprep.subr.bf16.mxu0 0
  %805 = vmatpush1.bf16.msra.mxu0 0
  %806 = vmatprep.subr.bf16.mxu0 0
  %807 = vmatpush1.bf16.msra.mxu0 0
  %808 = vmatprep.subr.bf16.mxu0 0
  %809 = vmatpush1.bf16.msra.mxu0 0
  %810 = vmatprep.subr.bf16.mxu0 %v691
  %811 = vmatpush1.bf16.msra.mxu0 %v690
  %812 = vmatprep.subr.bf16.mxu0 %v688
  %813 = vmatpush1.bf16.msra.mxu0 %v687
  %814 = vmatprep.subr.bf16.mxu0 %v685
  %815 = vmatpush1.bf16.msra.mxu0 %v684
  %816 = vmatprep.subr.bf16.mxu0 %v682
  %817 = vmatpush1.bf16.msra.mxu0 %v681
  %818 = vmatprep.subr.bf16.mxu0 0
  %819 = vmatpush2.bf16.msra.mxu0 0
  %820 = vmatprep.subr.bf16.mxu0 0
  %821 = vmatpush2.bf16.msra.mxu0 0
  %822 = vmatprep.subr.bf16.mxu0 0
  %823 = vmatpush2.bf16.msra.mxu0 0
  %824 = vmatprep.subr.bf16.mxu0 0
  %825 = vmatpush2.bf16.msra.mxu0 0
  %826 = vmatprep.subr.bf16.mxu0 0
  %827 = vmatpush2.bf16.msra.mxu0 0
  %828 = vmatprep.subr.bf16.mxu0 0
  %829 = vmatpush2.bf16.msra.mxu0 0
  %830 = vmatprep.subr.bf16.mxu0 0
  %831 = vmatpush2.bf16.msra.mxu0 0
  %832 = vmatprep.subr.bf16.mxu0 0
  %833 = vmatpush2.bf16.msra.mxu0 0
  %834 = vmatprep.mubr.bf16.mxu0 0
  %835 = vmatmul.mubr.bf16.gmra.mxu0 %v707
  %v836 = vpop.f32.mrf.mxu0
  %v837 = vadd.f32 0.0, %v836
  %v838 = vpop.f32.mrf.mxu0
  %v839 = vadd.f32 0.0, %v838
  %v840 = vpop.f32.mrf.mxu0
  %v841 = vadd.f32 0.0, %v840
  %v842 = vpop.f32.mrf.mxu0
  %v843 = vadd.f32 0.0, %v842
  %844 = vmatprep.mubr.bf16.mxu0 0
  %845 = vmatmul.mubr.bf16.gmra.mxu0 %v710
  %v846 = vpop.f32.mrf.mxu0
  %v847 = vadd.f32 0.0, %v846
  %v848 = vpop.f32.mrf.mxu0
  %v849 = vadd.f32 0.0, %v848
  %v850 = vpop.f32.mrf.mxu0
  %v851 = vadd.f32 0.0, %v850
  %v852 = vpop.f32.mrf.mxu0
  %v853 = vadd.f32 0.0, %v852
  %854 = vmatprep.mubr.bf16.mxu0 0
  %855 = vmatmul.mubr.bf16.gmra.mxu0 %v713
  %v856 = vpop.f32.mrf.mxu0
  %v857 = vadd.f32 0.0, %v856
  %v858 = vpop.f32.mrf.mxu0
  %v859 = vadd.f32 0.0, %v858
  %v860 = vpop.f32.mrf.mxu0
  %v861 = vadd.f32 0.0, %v860
  %v862 = vpop.f32.mrf.mxu0
  %v863 = vadd.f32 0.0, %v862
  %864 = vmatprep.mubr.bf16.mxu0 0
  %865 = vmatmul.mubr.bf16.gmra.mxu0 %v716
  %v866 = vpop.f32.mrf.mxu0
  %v867 = vadd.f32 0.0, %v866
  %v868 = vpop.f32.mrf.mxu0
  %v869 = vadd.f32 0.0, %v868
  %v870 = vpop.f32.mrf.mxu0
  %v871 = vadd.f32 0.0, %v870
  %v872 = vpop.f32.mrf.mxu0
  %v873 = vadd.f32 0.0, %v872
  %874 = vmatprep.mubr.bf16.mxu0 0
  %875 = vmatmul.mubr.bf16.gmra.mxu0 %v719
  %v876 = vpop.f32.mrf.mxu0
  %v877 = vadd.f32 0.0, %v876
  %v878 = vpop.f32.mrf.mxu0
  %v879 = vadd.f32 0.0, %v878
  %v880 = vpop.f32.mrf.mxu0
  %v881 = vadd.f32 0.0, %v880
  %v882 = vpop.f32.mrf.mxu0
  %v883 = vadd.f32 0.0, %v882
  %884 = vmatprep.mubr.bf16.mxu0 0
  %885 = vmatmul.mubr.bf16.gmra.mxu0 %v722
  %v886 = vpop.f32.mrf.mxu0
  %v887 = vadd.f32 0.0, %v886
  %v888 = vpop.f32.mrf.mxu0
  %v889 = vadd.f32 0.0, %v888
  %v890 = vpop.f32.mrf.mxu0
  %v891 = vadd.f32 0.0, %v890
  %v892 = vpop.f32.mrf.mxu0
  %v893 = vadd.f32 0.0, %v892
  %894 = vmatprep.mubr.bf16.mxu0 0
  %895 = vmatmul.mubr.bf16.gmra.mxu0 %v725
  %v896 = vpop.f32.mrf.mxu0
  %v897 = vadd.f32 0.0, %v896
  %v898 = vpop.f32.mrf.mxu0
  %v899 = vadd.f32 0.0, %v898
  %v900 = vpop.f32.mrf.mxu0
  %v901 = vadd.f32 0.0, %v900
  %v902 = vpop.f32.mrf.mxu0
  %v903 = vadd.f32 0.0, %v902
  %904 = vmatprep.mubr.bf16.mxu0 0
  %905 = vmatmul.mubr.bf16.gmra.mxu0 %v728
  %v906 = vpop.f32.mrf.mxu0
  %v907 = vadd.f32 0.0, %v906
  %v908 = vpop.f32.mrf.mxu0
  %v909 = vadd.f32 0.0, %v908
  %v910 = vpop.f32.mrf.mxu0
  %v911 = vadd.f32 0.0, %v910
  %v912 = vpop.f32.mrf.mxu0
  %v913 = vadd.f32 0.0, %v912
  %914 = vmatprep.mubr.bf16.mxu0 0
  %915 = vmatmul.mubr.bf16.gmra.mxu0 %v731
  %v916 = vpop.f32.mrf.mxu0
  %v917 = vadd.f32 0.0, %v916
  %v918 = vpop.f32.mrf.mxu0
  %v919 = vadd.f32 0.0, %v918
  %v920 = vpop.f32.mrf.mxu0
  %v921 = vadd.f32 0.0, %v920
  %v922 = vpop.f32.mrf.mxu0
  %v923 = vadd.f32 0.0, %v922
  %924 = vmatprep.mubr.bf16.mxu0 0
  %925 = vmatmul.mubr.bf16.gmra.mxu0 %v734
  %v926 = vpop.f32.mrf.mxu0
  %v927 = vadd.f32 0.0, %v926
  %v928 = vpop.f32.mrf.mxu0
  %v929 = vadd.f32 0.0, %v928
  %v930 = vpop.f32.mrf.mxu0
  %v931 = vadd.f32 0.0, %v930
  %v932 = vpop.f32.mrf.mxu0
  %v933 = vadd.f32 0.0, %v932
  %934 = vmatprep.mubr.bf16.mxu0 0
  %935 = vmatmul.mubr.bf16.gmra.mxu0 %v737
  %v936 = vpop.f32.mrf.mxu0
  %v937 = vadd.f32 0.0, %v936
  %v938 = vpop.f32.mrf.mxu0
  %v939 = vadd.f32 0.0, %v938
  %v940 = vpop.f32.mrf.mxu0
  %v941 = vadd.f32 0.0, %v940
  %v942 = vpop.f32.mrf.mxu0
  %v943 = vadd.f32 0.0, %v942
  %944 = vmatprep.mubr.bf16.mxu0 0
  %945 = vmatmul.mubr.bf16.gmra.mxu0 %v740
  %v946 = vpop.f32.mrf.mxu0
  %v947 = vadd.f32 0.0, %v946
  %v948 = vpop.f32.mrf.mxu0
  %v949 = vadd.f32 0.0, %v948
  %v950 = vpop.f32.mrf.mxu0
  %v951 = vadd.f32 0.0, %v950
  %v952 = vpop.f32.mrf.mxu0
  %v953 = vadd.f32 0.0, %v952
  %954 = vmatprep.mubr.bf16.mxu0 0
  %955 = vmatmul.mubr.bf16.gmra.mxu0 %v743
  %v956 = vpop.f32.mrf.mxu0
  %v957 = vadd.f32 0.0, %v956
  %v958 = vpop.f32.mrf.mxu0
  %v959 = vadd.f32 0.0, %v958
  %v960 = vpop.f32.mrf.mxu0
  %v961 = vadd.f32 0.0, %v960
  %v962 = vpop.f32.mrf.mxu0
  %v963 = vadd.f32 0.0, %v962
  %964 = vmatprep.mubr.bf16.mxu0 0
  %965 = vmatmul.mubr.bf16.gmra.mxu0 %v746
  %v966 = vpop.f32.mrf.mxu0
  %v967 = vadd.f32 0.0, %v966
  %v968 = vpop.f32.mrf.mxu0
  %v969 = vadd.f32 0.0, %v968
  %v970 = vpop.f32.mrf.mxu0
  %v971 = vadd.f32 0.0, %v970
  %v972 = vpop.f32.mrf.mxu0
  %v973 = vadd.f32 0.0, %v972
  %974 = vmatprep.mubr.bf16.mxu0 0
  %975 = vmatmul.mubr.bf16.gmra.mxu0 %v749
  %v976 = vpop.f32.mrf.mxu0
  %v977 = vadd.f32 0.0, %v976
  %v978 = vpop.f32.mrf.mxu0
  %v979 = vadd.f32 0.0, %v978
  %v980 = vpop.f32.mrf.mxu0
  %v981 = vadd.f32 0.0, %v980
  %v982 = vpop.f32.mrf.mxu0
  %v983 = vadd.f32 0.0, %v982
  %984 = vmatprep.mubr.bf16.mxu0 0
  %985 = vmatmul.mubr.bf16.gmra.mxu0 %v752
  %v986 = vpop.f32.mrf.mxu0
  %v987 = vadd.f32 0.0, %v986
  %v988 = vpop.f32.mrf.mxu0
  %v989 = vadd.f32 0.0, %v988
  %v990 = vpop.f32.mrf.mxu0
  %v991 = vadd.f32 0.0, %v990
  %v992 = vpop.f32.mrf.mxu0
  %v993 = vadd.f32 0.0, %v992
  %994 = vmatprep.mubr.bf16.mxu0 0
  %995 = vmatmul.mubr.bf16.gmra.mxu0 %v755
  %v996 = vpop.f32.mrf.mxu0
  %v997 = vadd.f32 0.0, %v996
  %v998 = vpop.f32.mrf.mxu0
  %v999 = vadd.f32 0.0, %v998
  %v1000 = vpop.f32.mrf.mxu0
  %v1001 = vadd.f32 0.0, %v1000
  %v1002 = vpop.f32.mrf.mxu0
  %v1003 = vadd.f32 0.0, %v1002
  %1004 = vmatprep.mubr.bf16.mxu0 0
  %1005 = vmatmul.mubr.bf16.gmra.mxu0 %v758
  %v1006 = vpop.f32.mrf.mxu0
  %v1007 = vadd.f32 0.0, %v1006
  %v1008 = vpop.f32.mrf.mxu0
  %v1009 = vadd.f32 0.0, %v1008
  %v1010 = vpop.f32.mrf.mxu0
  %v1011 = vadd.f32 0.0, %v1010
  %v1012 = vpop.f32.mrf.mxu0
  %v1013 = vadd.f32 0.0, %v1012
  %1014 = vmatprep.mubr.bf16.mxu0 0
  %1015 = vmatmul.mubr.bf16.gmra.mxu0 %v761
  %v1016 = vpop.f32.mrf.mxu0
  %v1017 = vadd.f32 0.0, %v1016
  %v1018 = vpop.f32.mrf.mxu0
  %v1019 = vadd.f32 0.0, %v1018
  %v1020 = vpop.f32.mrf.mxu0
  %v1021 = vadd.f32 0.0, %v1020
  %v1022 = vpop.f32.mrf.mxu0
  %v1023 = vadd.f32 0.0, %v1022
  %1024 = vmatprep.mubr.bf16.mxu0 0
  %1025 = vmatmul.mubr.bf16.gmra.mxu0 %v764
  %v1026 = vpop.f32.mrf.mxu0
  %v1027 = vadd.f32 0.0, %v1026
  %v1028 = vpop.f32.mrf.mxu0
  %v1029 = vadd.f32 0.0, %v1028
  %v1030 = vpop.f32.mrf.mxu0
  %v1031 = vadd.f32 0.0, %v1030
  %v1032 = vpop.f32.mrf.mxu0
  %v1033 = vadd.f32 0.0, %v1032
  %1034 = vmatprep.mubr.bf16.mxu0 0
  %1035 = vmatmul.mubr.bf16.gmra.mxu0 %v767
  %v1036 = vpop.f32.mrf.mxu0
  %v1037 = vadd.f32 0.0, %v1036
  %v1038 = vpop.f32.mrf.mxu0
  %v1039 = vadd.f32 0.0, %v1038
  %v1040 = vpop.f32.mrf.mxu0
  %v1041 = vadd.f32 0.0, %v1040
  %v1042 = vpop.f32.mrf.mxu0
  %v1043 = vadd.f32 0.0, %v1042
  %1044 = vmatprep.mubr.bf16.mxu0 0
  %1045 = vmatmul.mubr.bf16.gmra.mxu0 %v770
  %v1046 = vpop.f32.mrf.mxu0
  %v1047 = vadd.f32 0.0, %v1046
  %v1048 = vpop.f32.mrf.mxu0
  %v1049 = vadd.f32 0.0, %v1048
  %v1050 = vpop.f32.mrf.mxu0
  %v1051 = vadd.f32 0.0, %v1050
  %v1052 = vpop.f32.mrf.mxu0
  %v1053 = vadd.f32 0.0, %v1052
  %1054 = vmatprep.mubr.bf16.mxu0 0
  %1055 = vmatmul.mubr.bf16.gmra.mxu0 %v773
  %v1056 = vpop.f32.mrf.mxu0
  %v1057 = vadd.f32 0.0, %v1056
  %v1058 = vpop.f32.mrf.mxu0
  %v1059 = vadd.f32 0.0, %v1058
  %v1060 = vpop.f32.mrf.mxu0
  %v1061 = vadd.f32 0.0, %v1060
  %v1062 = vpop.f32.mrf.mxu0
  %v1063 = vadd.f32 0.0, %v1062
  %1064 = vmatprep.mubr.bf16.mxu0 0
  %1065 = vmatmul.mubr.bf16.gmra.mxu0 %v776
  %v1066 = vpop.f32.mrf.mxu0
  %v1067 = vadd.f32 0.0, %v1066
  %v1068 = vpop.f32.mrf.mxu0
  %v1069 = vadd.f32 0.0, %v1068
  %v1070 = vpop.f32.mrf.mxu0
  %v1071 = vadd.f32 0.0, %v1070
  %v1072 = vpop.f32.mrf.mxu0
  %v1073 = vadd.f32 0.0, %v1072
  %1074 = vmatprep.mubr.bf16.mxu0 0
  %1075 = vmatmul.mubr.bf16.gmra.mxu0 %v779
  %v1076 = vpop.f32.mrf.mxu0
  %v1077 = vadd.f32 0.0, %v1076
  %v1078 = vpop.f32.mrf.mxu0
  %v1079 = vadd.f32 0.0, %v1078
  %v1080 = vpop.f32.mrf.mxu0
  %v1081 = vadd.f32 0.0, %v1080
  %v1082 = vpop.f32.mrf.mxu0
  %v1083 = vadd.f32 0.0, %v1082
  %1084 = vmatprep.mubr.bf16.mxu0 0
  %1085 = vmatmul.mubr.bf16.gmra.mxu0 %v782
  %v1086 = vpop.f32.mrf.mxu0
  %v1087 = vadd.f32 0.0, %v1086
  %v1088 = vpop.f32.mrf.mxu0
  %v1089 = vadd.f32 0.0, %v1088
  %v1090 = vpop.f32.mrf.mxu0
  %v1091 = vadd.f32 0.0, %v1090
  %v1092 = vpop.f32.mrf.mxu0
  %v1093 = vadd.f32 0.0, %v1092
  %1094 = vmatprep.mubr.bf16.mxu0 0
  %1095 = vmatmul.mubr.bf16.gmra.mxu0 %v785
  %v1096 = vpop.f32.mrf.mxu0
  %v1097 = vadd.f32 0.0, %v1096
  %v1098 = vpop.f32.mrf.mxu0
  %v1099 = vadd.f32 0.0, %v1098
  %v1100 = vpop.f32.mrf.mxu0
  %v1101 = vadd.f32 0.0, %v1100
  %v1102 = vpop.f32.mrf.mxu0
  %v1103 = vadd.f32 0.0, %v1102
  %1104 = vmatprep.mubr.bf16.mxu0 0
  %1105 = vmatmul.mubr.bf16.gmra.mxu0 %v788
  %v1106 = vpop.f32.mrf.mxu0
  %v1107 = vadd.f32 0.0, %v1106
  %v1108 = vpop.f32.mrf.mxu0
  %v1109 = vadd.f32 0.0, %v1108
  %v1110 = vpop.f32.mrf.mxu0
  %v1111 = vadd.f32 0.0, %v1110
  %v1112 = vpop.f32.mrf.mxu0
  %v1113 = vadd.f32 0.0, %v1112
  %1114 = vmatprep.mubr.bf16.mxu0 0
  %1115 = vmatmul.mubr.bf16.gmra.mxu0 %v791
  %v1116 = vpop.f32.mrf.mxu0
  %v1117 = vadd.f32 0.0, %v1116
  %v1118 = vpop.f32.mrf.mxu0
  %v1119 = vadd.f32 0.0, %v1118
  %v1120 = vpop.f32.mrf.mxu0
  %v1121 = vadd.f32 0.0, %v1120
  %v1122 = vpop.f32.mrf.mxu0
  %v1123 = vadd.f32 0.0, %v1122
  %1124 = vmatprep.mubr.bf16.mxu0 0
  %1125 = vmatmul.mubr.bf16.gmra.mxu0 %v794
  %v1126 = vpop.f32.mrf.mxu0
  %v1127 = vadd.f32 0.0, %v1126
  %v1128 = vpop.f32.mrf.mxu0
  %v1129 = vadd.f32 0.0, %v1128
  %v1130 = vpop.f32.mrf.mxu0
  %v1131 = vadd.f32 0.0, %v1130
  %v1132 = vpop.f32.mrf.mxu0
  %v1133 = vadd.f32 0.0, %v1132
  %1134 = vmatprep.mubr.bf16.mxu0 0
  %1135 = vmatmul.mubr.bf16.gmra.mxu0 %v797
  %v1136 = vpop.f32.mrf.mxu0
  %v1137 = vadd.f32 0.0, %v1136
  %v1138 = vpop.f32.mrf.mxu0
  %v1139 = vadd.f32 0.0, %v1138
  %v1140 = vpop.f32.mrf.mxu0
  %v1141 = vadd.f32 0.0, %v1140
  %v1142 = vpop.f32.mrf.mxu0
  %v1143 = vadd.f32 0.0, %v1142
  %1144 = vmatprep.mubr.bf16.mxu0 0
  %1145 = vmatmul.mubr.bf16.gmra.mxu0 %v800
  %v1146 = vpop.f32.mrf.mxu0
  %v1147 = vadd.f32 0.0, %v1146
  %v1148 = vpop.f32.mrf.mxu0
  %v1149 = vadd.f32 0.0, %v1148
  %v1150 = vpop.f32.mrf.mxu0
  %v1151 = vadd.f32 0.0, %v1150
  %v1152 = vpop.f32.mrf.mxu0
  %v1153 = vadd.f32 0.0, %v1152
  %1154 = vdwg.mxu0
  %1155 = vmatprep.subr.bf16.mxu0 0
  %1156 = vmatpush1.bf16.msra.mxu0 0
  %1157 = vmatprep.subr.bf16.mxu0 0
  %1158 = vmatpush1.bf16.msra.mxu0 0
  %1159 = vmatprep.subr.bf16.mxu0 0
  %1160 = vmatpush1.bf16.msra.mxu0 0
  %1161 = vmatprep.subr.bf16.mxu0 0
  %1162 = vmatpush1.bf16.msra.mxu0 0
  %1163 = vmatprep.subr.bf16.mxu0 0
  %1164 = vmatpush1.bf16.msra.mxu0 %v692
  %1165 = vmatprep.subr.bf16.mxu0 0
  %1166 = vmatpush1.bf16.msra.mxu0 %v689
  %1167 = vmatprep.subr.bf16.mxu0 0
  %1168 = vmatpush1.bf16.msra.mxu0 %v686
  %1169 = vmatprep.subr.bf16.mxu0 0
  %1170 = vmatpush1.bf16.msra.mxu0 %v683
  %1171 = vmatprep.subr.bf16.mxu0 0
  %1172 = vmatpush2.bf16.msra.mxu0 0
  %1173 = vmatprep.subr.bf16.mxu0 0
  %1174 = vmatpush2.bf16.msra.mxu0 0
  %1175 = vmatprep.subr.bf16.mxu0 0
  %1176 = vmatpush2.bf16.msra.mxu0 0
  %1177 = vmatprep.subr.bf16.mxu0 0
  %1178 = vmatpush2.bf16.msra.mxu0 0
  %1179 = vmatprep.subr.bf16.mxu0 0
  %1180 = vmatpush2.bf16.msra.mxu0 0
  %1181 = vmatprep.subr.bf16.mxu0 0
  %1182 = vmatpush2.bf16.msra.mxu0 0
  %1183 = vmatprep.subr.bf16.mxu0 0
  %1184 = vmatpush2.bf16.msra.mxu0 0
  %1185 = vmatprep.subr.bf16.mxu0 0
  %1186 = vmatpush2.bf16.msra.mxu0 0
  %1187 = vmatprep.mubr.bf16.mxu0 0
  %1188 = vmatmul.mubr.bf16.gmra.mxu0 %v707
  %v1189 = vpop.f32.mrf.mxu0
  %v1190 = vadd.f32 0.0, %v1189
  %v1191 = vpop.f32.mrf.mxu0
  %v1192 = vpop.f32.mrf.mxu0
  %v1193 = vadd.f32 0.0, %v1192
  %v1194 = vpop.f32.mrf.mxu0
  %1195 = vmatprep.mubr.bf16.mxu0 0
  %1196 = vmatmul.mubr.bf16.gmra.mxu0 %v710
  %v1197 = vpop.f32.mrf.mxu0
  %v1198 = vadd.f32 0.0, %v1197
  %v1199 = vpop.f32.mrf.mxu0
  %v1200 = vpop.f32.mrf.mxu0
  %v1201 = vadd.f32 0.0, %v1200
  %v1202 = vpop.f32.mrf.mxu0
  %1203 = vmatprep.mubr.bf16.mxu0 0
  %1204 = vmatmul.mubr.bf16.gmra.mxu0 %v713
  %v1205 = vpop.f32.mrf.mxu0
  %v1206 = vadd.f32 0.0, %v1205
  %v1207 = vpop.f32.mrf.mxu0
  %v1208 = vpop.f32.mrf.mxu0
  %v1209 = vadd.f32 0.0, %v1208
  %v1210 = vpop.f32.mrf.mxu0
  %1211 = vmatprep.mubr.bf16.mxu0 0
  %1212 = vmatmul.mubr.bf16.gmra.mxu0 %v716
  %v1213 = vpop.f32.mrf.mxu0
  %v1214 = vadd.f32 0.0, %v1213
  %v1215 = vpop.f32.mrf.mxu0
  %v1216 = vpop.f32.mrf.mxu0
  %v1217 = vadd.f32 0.0, %v1216
  %v1218 = vpop.f32.mrf.mxu0
  %1219 = vmatprep.mubr.bf16.mxu0 0
  %1220 = vmatmul.mubr.bf16.gmra.mxu0 %v719
  %v1221 = vpop.f32.mrf.mxu0
  %v1222 = vadd.f32 0.0, %v1221
  %v1223 = vpop.f32.mrf.mxu0
  %v1224 = vpop.f32.mrf.mxu0
  %v1225 = vadd.f32 0.0, %v1224
  %v1226 = vpop.f32.mrf.mxu0
  %1227 = vmatprep.mubr.bf16.mxu0 0
  %1228 = vmatmul.mubr.bf16.gmra.mxu0 %v722
  %v1229 = vpop.f32.mrf.mxu0
  %v1230 = vadd.f32 0.0, %v1229
  %v1231 = vpop.f32.mrf.mxu0
  %v1232 = vpop.f32.mrf.mxu0
  %v1233 = vadd.f32 0.0, %v1232
  %v1234 = vpop.f32.mrf.mxu0
  %1235 = vmatprep.mubr.bf16.mxu0 0
  %1236 = vmatmul.mubr.bf16.gmra.mxu0 %v725
  %v1237 = vpop.f32.mrf.mxu0
  %v1238 = vadd.f32 0.0, %v1237
  %v1239 = vpop.f32.mrf.mxu0
  %v1240 = vpop.f32.mrf.mxu0
  %v1241 = vadd.f32 0.0, %v1240
  %v1242 = vpop.f32.mrf.mxu0
  %1243 = vmatprep.mubr.bf16.mxu0 0
  %1244 = vmatmul.mubr.bf16.gmra.mxu0 %v728
  %v1245 = vpop.f32.mrf.mxu0
  %v1246 = vadd.f32 0.0, %v1245
  %v1247 = vpop.f32.mrf.mxu0
  %v1248 = vpop.f32.mrf.mxu0
  %v1249 = vadd.f32 0.0, %v1248
  %v1250 = vpop.f32.mrf.mxu0
  %1251 = vmatprep.mubr.bf16.mxu0 0
  %1252 = vmatmul.mubr.bf16.gmra.mxu0 %v731
  %v1253 = vpop.f32.mrf.mxu0
  %v1254 = vadd.f32 0.0, %v1253
  %v1255 = vpop.f32.mrf.mxu0
  %v1256 = vpop.f32.mrf.mxu0
  %v1257 = vadd.f32 0.0, %v1256
  %v1258 = vpop.f32.mrf.mxu0
  %1259 = vmatprep.mubr.bf16.mxu0 0
  %1260 = vmatmul.mubr.bf16.gmra.mxu0 %v734
  %v1261 = vpop.f32.mrf.mxu0
  %v1262 = vadd.f32 0.0, %v1261
  %v1263 = vpop.f32.mrf.mxu0
  %v1264 = vpop.f32.mrf.mxu0
  %v1265 = vadd.f32 0.0, %v1264
  %v1266 = vpop.f32.mrf.mxu0
  %1267 = vmatprep.mubr.bf16.mxu0 0
  %1268 = vmatmul.mubr.bf16.gmra.mxu0 %v737
  %v1269 = vpop.f32.mrf.mxu0
  %v1270 = vadd.f32 0.0, %v1269
  %v1271 = vpop.f32.mrf.mxu0
  %v1272 = vpop.f32.mrf.mxu0
  %v1273 = vadd.f32 0.0, %v1272
  %v1274 = vpop.f32.mrf.mxu0
  %1275 = vmatprep.mubr.bf16.mxu0 0
  %1276 = vmatmul.mubr.bf16.gmra.mxu0 %v740
  %v1277 = vpop.f32.mrf.mxu0
  %v1278 = vadd.f32 0.0, %v1277
  %v1279 = vpop.f32.mrf.mxu0
  %v1280 = vpop.f32.mrf.mxu0
  %v1281 = vadd.f32 0.0, %v1280
  %v1282 = vpop.f32.mrf.mxu0
  %1283 = vmatprep.mubr.bf16.mxu0 0
  %1284 = vmatmul.mubr.bf16.gmra.mxu0 %v743
  %v1285 = vpop.f32.mrf.mxu0
  %v1286 = vadd.f32 0.0, %v1285
  %v1287 = vpop.f32.mrf.mxu0
  %v1288 = vpop.f32.mrf.mxu0
  %v1289 = vadd.f32 0.0, %v1288
  %v1290 = vpop.f32.mrf.mxu0
  %1291 = vmatprep.mubr.bf16.mxu0 0
  %1292 = vmatmul.mubr.bf16.gmra.mxu0 %v746
  %v1293 = vpop.f32.mrf.mxu0
  %v1294 = vadd.f32 0.0, %v1293
  %v1295 = vpop.f32.mrf.mxu0
  %v1296 = vpop.f32.mrf.mxu0
  %v1297 = vadd.f32 0.0, %v1296
  %v1298 = vpop.f32.mrf.mxu0
  %1299 = vmatprep.mubr.bf16.mxu0 0
  %1300 = vmatmul.mubr.bf16.gmra.mxu0 %v749
  %v1301 = vpop.f32.mrf.mxu0
  %v1302 = vadd.f32 0.0, %v1301
  %v1303 = vpop.f32.mrf.mxu0
  %v1304 = vpop.f32.mrf.mxu0
  %v1305 = vadd.f32 0.0, %v1304
  %v1306 = vpop.f32.mrf.mxu0
  %1307 = vmatprep.mubr.bf16.mxu0 0
  %1308 = vmatmul.mubr.bf16.gmra.mxu0 %v752
  %v1309 = vpop.f32.mrf.mxu0
  %v1310 = vadd.f32 0.0, %v1309
  %v1311 = vpop.f32.mrf.mxu0
  %v1312 = vpop.f32.mrf.mxu0
  %v1313 = vadd.f32 0.0, %v1312
  %v1314 = vpop.f32.mrf.mxu0
  %1315 = vmatprep.mubr.bf16.mxu0 0
  %1316 = vmatmul.mubr.bf16.gmra.mxu0 %v755
  %v1317 = vpop.f32.mrf.mxu0
  %v1318 = vadd.f32 0.0, %v1317
  %v1319 = vpop.f32.mrf.mxu0
  %v1320 = vpop.f32.mrf.mxu0
  %v1321 = vadd.f32 0.0, %v1320
  %v1322 = vpop.f32.mrf.mxu0
  %1323 = vmatprep.mubr.bf16.mxu0 0
  %1324 = vmatmul.mubr.bf16.gmra.mxu0 %v758
  %v1325 = vpop.f32.mrf.mxu0
  %v1326 = vadd.f32 0.0, %v1325
  %v1327 = vpop.f32.mrf.mxu0
  %v1328 = vpop.f32.mrf.mxu0
  %v1329 = vadd.f32 0.0, %v1328
  %v1330 = vpop.f32.mrf.mxu0
  %1331 = vmatprep.mubr.bf16.mxu0 0
  %1332 = vmatmul.mubr.bf16.gmra.mxu0 %v761
  %v1333 = vpop.f32.mrf.mxu0
  %v1334 = vadd.f32 0.0, %v1333
  %v1335 = vpop.f32.mrf.mxu0
  %v1336 = vpop.f32.mrf.mxu0
  %v1337 = vadd.f32 0.0, %v1336
  %v1338 = vpop.f32.mrf.mxu0
  %1339 = vmatprep.mubr.bf16.mxu0 0
  %1340 = vmatmul.mubr.bf16.gmra.mxu0 %v764
  %v1341 = vpop.f32.mrf.mxu0
  %v1342 = vadd.f32 0.0, %v1341
  %v1343 = vpop.f32.mrf.mxu0
  %v1344 = vpop.f32.mrf.mxu0
  %v1345 = vadd.f32 0.0, %v1344
  %v1346 = vpop.f32.mrf.mxu0
  %1347 = vmatprep.mubr.bf16.mxu0 0
  %1348 = vmatmul.mubr.bf16.gmra.mxu0 %v767
  %v1349 = vpop.f32.mrf.mxu0
  %v1350 = vadd.f32 0.0, %v1349
  %v1351 = vpop.f32.mrf.mxu0
  %v1352 = vpop.f32.mrf.mxu0
  %v1353 = vadd.f32 0.0, %v1352
  %v1354 = vpop.f32.mrf.mxu0
  %1355 = vmatprep.mubr.bf16.mxu0 0
  %1356 = vmatmul.mubr.bf16.gmra.mxu0 %v770
  %v1357 = vpop.f32.mrf.mxu0
  %v1358 = vadd.f32 0.0, %v1357
  %v1359 = vpop.f32.mrf.mxu0
  %v1360 = vpop.f32.mrf.mxu0
  %v1361 = vadd.f32 0.0, %v1360
  %v1362 = vpop.f32.mrf.mxu0
  %1363 = vmatprep.mubr.bf16.mxu0 0
  %1364 = vmatmul.mubr.bf16.gmra.mxu0 %v773
  %v1365 = vpop.f32.mrf.mxu0
  %v1366 = vadd.f32 0.0, %v1365
  %v1367 = vpop.f32.mrf.mxu0
  %v1368 = vpop.f32.mrf.mxu0
  %v1369 = vadd.f32 0.0, %v1368
  %v1370 = vpop.f32.mrf.mxu0
  %1371 = vmatprep.mubr.bf16.mxu0 0
  %1372 = vmatmul.mubr.bf16.gmra.mxu0 %v776
  %v1373 = vpop.f32.mrf.mxu0
  %v1374 = vadd.f32 0.0, %v1373
  %v1375 = vpop.f32.mrf.mxu0
  %v1376 = vpop.f32.mrf.mxu0
  %v1377 = vadd.f32 0.0, %v1376
  %v1378 = vpop.f32.mrf.mxu0
  %1379 = vmatprep.mubr.bf16.mxu0 0
  %1380 = vmatmul.mubr.bf16.gmra.mxu0 %v779
  %v1381 = vpop.f32.mrf.mxu0
  %v1382 = vadd.f32 0.0, %v1381
  %v1383 = vpop.f32.mrf.mxu0
  %v1384 = vpop.f32.mrf.mxu0
  %v1385 = vadd.f32 0.0, %v1384
  %v1386 = vpop.f32.mrf.mxu0
  %1387 = vmatprep.mubr.bf16.mxu0 0
  %1388 = vmatmul.mubr.bf16.gmra.mxu0 %v782
  %v1389 = vpop.f32.mrf.mxu0
  %v1390 = vadd.f32 0.0, %v1389
  %v1391 = vpop.f32.mrf.mxu0
  %v1392 = vpop.f32.mrf.mxu0
  %v1393 = vadd.f32 0.0, %v1392
  %v1394 = vpop.f32.mrf.mxu0
  %1395 = vmatprep.mubr.bf16.mxu0 0
  %1396 = vmatmul.mubr.bf16.gmra.mxu0 %v785
  %v1397 = vpop.f32.mrf.mxu0
  %v1398 = vadd.f32 0.0, %v1397
  %v1399 = vpop.f32.mrf.mxu0
  %v1400 = vpop.f32.mrf.mxu0
  %v1401 = vadd.f32 0.0, %v1400
  %v1402 = vpop.f32.mrf.mxu0
  %1403 = vmatprep.mubr.bf16.mxu0 0
  %1404 = vmatmul.mubr.bf16.gmra.mxu0 %v788
  %v1405 = vpop.f32.mrf.mxu0
  %v1406 = vadd.f32 0.0, %v1405
  %v1407 = vpop.f32.mrf.mxu0
  %v1408 = vpop.f32.mrf.mxu0
  %v1409 = vadd.f32 0.0, %v1408
  %v1410 = vpop.f32.mrf.mxu0
  %1411 = vmatprep.mubr.bf16.mxu0 0
  %1412 = vmatmul.mubr.bf16.gmra.mxu0 %v791
  %v1413 = vpop.f32.mrf.mxu0
  %v1414 = vadd.f32 0.0, %v1413
  %v1415 = vpop.f32.mrf.mxu0
  %v1416 = vpop.f32.mrf.mxu0
  %v1417 = vadd.f32 0.0, %v1416
  %v1418 = vpop.f32.mrf.mxu0
  %1419 = vmatprep.mubr.bf16.mxu0 0
  %1420 = vmatmul.mubr.bf16.gmra.mxu0 %v794
  %v1421 = vpop.f32.mrf.mxu0
  %v1422 = vadd.f32 0.0, %v1421
  %v1423 = vpop.f32.mrf.mxu0
  %v1424 = vpop.f32.mrf.mxu0
  %v1425 = vadd.f32 0.0, %v1424
  %v1426 = vpop.f32.mrf.mxu0
  %1427 = vmatprep.mubr.bf16.mxu0 0
  %1428 = vmatmul.mubr.bf16.gmra.mxu0 %v797
  %v1429 = vpop.f32.mrf.mxu0
  %v1430 = vadd.f32 0.0, %v1429
  %v1431 = vpop.f32.mrf.mxu0
  %v1432 = vpop.f32.mrf.mxu0
  %v1433 = vadd.f32 0.0, %v1432
  %v1434 = vpop.f32.mrf.mxu0
  %1435 = vmatprep.mubr.bf16.mxu0 0
  %1436 = vmatmul.mubr.bf16.gmra.mxu0 %v800
  %v1437 = vpop.f32.mrf.mxu0
  %v1438 = vadd.f32 0.0, %v1437
  %v1439 = vpop.f32.mrf.mxu0
  %v1440 = vpop.f32.mrf.mxu0
  %v1441 = vadd.f32 0.0, %v1440
  %v1442 = vpop.f32.mrf.mxu0
  %1443 = vdwg.mxu0
  %v1444 = vadd.f32 %v209, %v837
  %v1445 = vadd.f32 %v210, %v839
  %v1446 = vadd.f32 %v211, %v1190
  %v1447 = vadd.f32 %v212, %v841
  %v1448 = vadd.f32 %v213, %v843
  %v1449 = vadd.f32 %v214, %v1193
  %v1450 = vadd.f32 %v215, %v847
  %v1451 = vadd.f32 %v216, %v849
  %v1452 = vadd.f32 %v217, %v1198
  %v1453 = vadd.f32 %v218, %v851
  %v1454 = vadd.f32 %v219, %v853
  %v1455 = vadd.f32 %v220, %v1201
  %v1456 = vadd.f32 %v221, %v857
  %v1457 = vadd.f32 %v222, %v859
  %v1458 = vadd.f32 %v223, %v1206
  %v1459 = vadd.f32 %v224, %v861
  %v1460 = vadd.f32 %v225, %v863
  %v1461 = vadd.f32 %v226, %v1209
  %v1462 = vadd.f32 %v227, %v867
  %v1463 = vadd.f32 %v228, %v869
  %v1464 = vadd.f32 %v229, %v1214
  %v1465 = vadd.f32 %v230, %v871
  %v1466 = vadd.f32 %v231, %v873
  %v1467 = vadd.f32 %v232, %v1217
  %v1468 = vadd.f32 %v233, %v877
  %v1469 = vadd.f32 %v234, %v879
  %v1470 = vadd.f32 %v235, %v1222
  %v1471 = vadd.f32 %v236, %v881
  %v1472 = vadd.f32 %v237, %v883
  %v1473 = vadd.f32 %v238, %v1225
  %v1474 = vadd.f32 %v239, %v887
  %v1475 = vadd.f32 %v240, %v889
  %v1476 = vadd.f32 %v241, %v1230
  %v1477 = vadd.f32 %v242, %v891
  %v1478 = vadd.f32 %v243, %v893
  %v1479 = vadd.f32 %v244, %v1233
  %v1480 = vadd.f32 %v245, %v897
  %v1481 = vadd.f32 %v246, %v899
  %v1482 = vadd.f32 %v247, %v1238
  %v1483 = vadd.f32 %v248, %v901
  %v1484 = vadd.f32 %v249, %v903
  %v1485 = vadd.f32 %v250, %v1241
  %v1486 = vadd.f32 %v251, %v907
  %v1487 = vadd.f32 %v252, %v909
  %v1488 = vadd.f32 %v253, %v1246
  %v1489 = vadd.f32 %v254, %v911
  %v1490 = vadd.f32 %v255, %v913
  %v1491 = vadd.f32 %v256, %v1249
  %v1492 = vadd.f32 %v257, %v917
  %v1493 = vadd.f32 %v258, %v919
  %v1494 = vadd.f32 %v259, %v1254
  %v1495 = vadd.f32 %v260, %v921
  %v1496 = vadd.f32 %v261, %v923
  %v1497 = vadd.f32 %v262, %v1257
  %v1498 = vadd.f32 %v263, %v927
  %v1499 = vadd.f32 %v264, %v929
  %v1500 = vadd.f32 %v265, %v1262
  %v1501 = vadd.f32 %v266, %v931
  %v1502 = vadd.f32 %v267, %v933
  %v1503 = vadd.f32 %v268, %v1265
  %v1504 = vadd.f32 %v269, %v937
  %v1505 = vadd.f32 %v270, %v939
  %v1506 = vadd.f32 %v271, %v1270
  %v1507 = vadd.f32 %v272, %v941
  %v1508 = vadd.f32 %v273, %v943
  %v1509 = vadd.f32 %v274, %v1273
  %v1510 = vadd.f32 %v275, %v947
  %v1511 = vadd.f32 %v276, %v949
  %v1512 = vadd.f32 %v277, %v1278
  %v1513 = vadd.f32 %v278, %v951
  %v1514 = vadd.f32 %v279, %v953
  %v1515 = vadd.f32 %v280, %v1281
  %v1516 = vadd.f32 %v281, %v957
  %v1517 = vadd.f32 %v282, %v959
  %v1518 = vadd.f32 %v283, %v1286
  %v1519 = vadd.f32 %v284, %v961
  %v1520 = vadd.f32 %v285, %v963
  %v1521 = vadd.f32 %v286, %v1289
  %v1522 = vadd.f32 %v287, %v967
  %v1523 = vadd.f32 %v288, %v969
  %v1524 = vadd.f32 %v289, %v1294
  %v1525 = vadd.f32 %v290, %v971
  %v1526 = vadd.f32 %v291, %v973
  %v1527 = vadd.f32 %v292, %v1297
  %v1528 = vadd.f32 %v293, %v977
  %v1529 = vadd.f32 %v294, %v979
  %v1530 = vadd.f32 %v295, %v1302
  %v1531 = vadd.f32 %v296, %v981
  %v1532 = vadd.f32 %v297, %v983
  %v1533 = vadd.f32 %v298, %v1305
  %v1534 = vadd.f32 %v299, %v987
  %v1535 = vadd.f32 %v300, %v989
  %v1536 = vadd.f32 %v301, %v1310
  %v1537 = vadd.f32 %v302, %v991
  %v1538 = vadd.f32 %v303, %v993
  %v1539 = vadd.f32 %v304, %v1313
  %v1540 = vadd.f32 %v305, %v997
  %v1541 = vadd.f32 %v306, %v999
  %v1542 = vadd.f32 %v307, %v1318
  %v1543 = vadd.f32 %v308, %v1001
  %v1544 = vadd.f32 %v309, %v1003
  %v1545 = vadd.f32 %v310, %v1321
  %v1546 = vadd.f32 %v311, %v1007
  %v1547 = vadd.f32 %v312, %v1009
  %v1548 = vadd.f32 %v313, %v1326
  %v1549 = vadd.f32 %v314, %v1011
  %v1550 = vadd.f32 %v315, %v1013
  %v1551 = vadd.f32 %v316, %v1329
  %v1552 = vadd.f32 %v317, %v1017
  %v1553 = vadd.f32 %v318, %v1019
  %v1554 = vadd.f32 %v319, %v1334
  %v1555 = vadd.f32 %v320, %v1021
  %v1556 = vadd.f32 %v321, %v1023
  %v1557 = vadd.f32 %v322, %v1337
  %v1558 = vadd.f32 %v323, %v1027
  %v1559 = vadd.f32 %v324, %v1029
  %v1560 = vadd.f32 %v325, %v1342
  %v1561 = vadd.f32 %v326, %v1031
  %v1562 = vadd.f32 %v327, %v1033
  %v1563 = vadd.f32 %v328, %v1345
  %v1564 = vadd.f32 %v329, %v1037
  %v1565 = vadd.f32 %v330, %v1039
  %v1566 = vadd.f32 %v331, %v1350
  %v1567 = vadd.f32 %v332, %v1041
  %v1568 = vadd.f32 %v333, %v1043
  %v1569 = vadd.f32 %v334, %v1353
  %v1570 = vadd.f32 %v335, %v1047
  %v1571 = vadd.f32 %v336, %v1049
  %v1572 = vadd.f32 %v337, %v1358
  %v1573 = vadd.f32 %v338, %v1051
  %v1574 = vadd.f32 %v339, %v1053
  %v1575 = vadd.f32 %v340, %v1361
  %v1576 = vadd.f32 %v341, %v1057
  %v1577 = vadd.f32 %v342, %v1059
  %v1578 = vadd.f32 %v343, %v1366
  %v1579 = vadd.f32 %v344, %v1061
  %v1580 = vadd.f32 %v345, %v1063
  %v1581 = vadd.f32 %v346, %v1369
  %v1582 = vadd.f32 %v347, %v1067
  %v1583 = vadd.f32 %v348, %v1069
  %v1584 = vadd.f32 %v349, %v1374
  %v1585 = vadd.f32 %v350, %v1071
  %v1586 = vadd.f32 %v351, %v1073
  %v1587 = vadd.f32 %v352, %v1377
  %v1588 = vadd.f32 %v353, %v1077
  %v1589 = vadd.f32 %v354, %v1079
  %v1590 = vadd.f32 %v355, %v1382
  %v1591 = vadd.f32 %v356, %v1081
  %v1592 = vadd.f32 %v357, %v1083
  %v1593 = vadd.f32 %v358, %v1385
  %v1594 = vadd.f32 %v359, %v1087
  %v1595 = vadd.f32 %v360, %v1089
  %v1596 = vadd.f32 %v361, %v1390
  %v1597 = vadd.f32 %v362, %v1091
  %v1598 = vadd.f32 %v363, %v1093
  %v1599 = vadd.f32 %v364, %v1393
  %v1600 = vadd.f32 %v365, %v1097
  %v1601 = vadd.f32 %v366, %v1099
  %v1602 = vadd.f32 %v367, %v1398
  %v1603 = vadd.f32 %v368, %v1101
  %v1604 = vadd.f32 %v369, %v1103
  %v1605 = vadd.f32 %v370, %v1401
  %v1606 = vadd.f32 %v371, %v1107
  %v1607 = vadd.f32 %v372, %v1109
  %v1608 = vadd.f32 %v373, %v1406
  %v1609 = vadd.f32 %v374, %v1111
  %v1610 = vadd.f32 %v375, %v1113
  %v1611 = vadd.f32 %v376, %v1409
  %v1612 = vadd.f32 %v377, %v1117
  %v1613 = vadd.f32 %v378, %v1119
  %v1614 = vadd.f32 %v379, %v1414
  %v1615 = vadd.f32 %v380, %v1121
  %v1616 = vadd.f32 %v381, %v1123
  %v1617 = vadd.f32 %v382, %v1417
  %v1618 = vadd.f32 %v383, %v1127
  %v1619 = vadd.f32 %v384, %v1129
  %v1620 = vadd.f32 %v385, %v1422
  %v1621 = vadd.f32 %v386, %v1131
  %v1622 = vadd.f32 %v387, %v1133
  %v1623 = vadd.f32 %v388, %v1425
  %v1624 = vadd.f32 %v389, %v1137
  %v1625 = vadd.f32 %v390, %v1139
  %v1626 = vadd.f32 %v391, %v1430
  %v1627 = vadd.f32 %v392, %v1141
  %v1628 = vadd.f32 %v393, %v1143
  %v1629 = vadd.f32 %v394, %v1433
  %v1630 = vadd.f32 %v395, %v1147
  %v1631 = vadd.f32 %v396, %v1149
  %v1632 = vadd.f32 %v397, %v1438
  %v1633 = vadd.f32 %v398, %v1151
  %v1634 = vadd.f32 %v399, %v1153
  %v1635 = vadd.f32 %v400, %v1441
  %1636 = vst [vmem:[#allocation2] sm:$0xff] %v1444
  %1637 = vst [vmem:[#allocation2 + $0x8] sm:$0xff] %v1445
  %1638 = vst.msk [vmem:[#allocation2 + $0x10] sm:$0xff] %vm705, %v1446
  %1639 = vst [vmem:[#allocation2 + $0x18] sm:$0xff] %v1447
  %1640 = vst [vmem:[#allocation2 + $0x20] sm:$0xff] %v1448
  %1641 = vst.msk [vmem:[#allocation2 + $0x28] sm:$0xff] %vm705, %v1449
  %1642 = vst [vmem:[#allocation2 + $0x30] sm:$0xff] %v1450
  %1643 = vst [vmem:[#allocation2 + $0x38] sm:$0xff] %v1451
  %1644 = vst.msk [vmem:[#allocation2 + $0x40] sm:$0xff] %vm705, %v1452
  %1645 = vst [vmem:[#allocation2 + $0x48] sm:$0xff] %v1453
  %1646 = vst [vmem:[#allocation2 + $0x50] sm:$0xff] %v1454
  %1647 = vst.msk [vmem:[#allocation2 + $0x58] sm:$0xff] %vm705, %v1455
  %1648 = vst [vmem:[#allocation2 + $0x60] sm:$0xff] %v1456
  %1649 = vst [vmem:[#allocation2 + $0x68] sm:$0xff] %v1457
  %1650 = vst.msk [vmem:[#allocation2 + $0x70] sm:$0xff] %vm705, %v1458
  %1651 = vst [vmem:[#allocation2 + $0x78] sm:$0xff] %v1459
  %1652 = vst [vmem:[#allocation2 + $0x80] sm:$0xff] %v1460
  %1653 = vst.msk [vmem:[#allocation2 + $0x88] sm:$0xff] %vm705, %v1461
  %1654 = vst [vmem:[#allocation2 + $0x90] sm:$0xff] %v1462
  %1655 = vst [vmem:[#allocation2 + $0x98] sm:$0xff] %v1463
  %1656 = vst.msk [vmem:[#allocation2 + $0xa0] sm:$0xff] %vm705, %v1464
  %1657 = vst [vmem:[#allocation2 + $0xa8] sm:$0xff] %v1465
  %1658 = vst [vmem:[#allocation2 + $0xb0] sm:$0xff] %v1466
  %1659 = vst.msk [vmem:[#allocation2 + $0xb8] sm:$0xff] %vm705, %v1467
  %1660 = vst [vmem:[#allocation2 + $0xc0] sm:$0xff] %v1468
  %1661 = vst [vmem:[#allocation2 + $0xc8] sm:$0xff] %v1469
  %1662 = vst.msk [vmem:[#allocation2 + $0xd0] sm:$0xff] %vm705, %v1470
  %1663 = vst [vmem:[#allocation2 + $0xd8] sm:$0xff] %v1471
  %1664 = vst [vmem:[#allocation2 + $0xe0] sm:$0xff] %v1472
  %1665 = vst.msk [vmem:[#allocation2 + $0xe8] sm:$0xff] %vm705, %v1473
  %1666 = vst [vmem:[#allocation2 + $0xf0] sm:$0xff] %v1474
  %1667 = vst [vmem:[#allocation2 + $0xf8] sm:$0xff] %v1475
  %1668 = vst.msk [vmem:[#allocation2 + $0x100] sm:$0xff] %vm705, %v1476
  %1669 = vst [vmem:[#allocation2 + $0x108] sm:$0xff] %v1477
  %1670 = vst [vmem:[#allocation2 + $0x110] sm:$0xff] %v1478
  %1671 = vst.msk [vmem:[#allocation2 + $0x118] sm:$0xff] %vm705, %v1479
  %1672 = vst [vmem:[#allocation2 + $0x120] sm:$0xff] %v1480
  %1673 = vst [vmem:[#allocation2 + $0x128] sm:$0xff] %v1481
  %1674 = vst.msk [vmem:[#allocation2 + $0x130] sm:$0xff] %vm705, %v1482
  %1675 = vst [vmem:[#allocation2 + $0x138] sm:$0xff] %v1483
  %1676 = vst [vmem:[#allocation2 + $0x140] sm:$0xff] %v1484
  %1677 = vst.msk [vmem:[#allocation2 + $0x148] sm:$0xff] %vm705, %v1485
  %1678 = vst [vmem:[#allocation2 + $0x150] sm:$0xff] %v1486
  %1679 = vst [vmem:[#allocation2 + $0x158] sm:$0xff] %v1487
  %1680 = vst.msk [vmem:[#allocation2 + $0x160] sm:$0xff] %vm705, %v1488
  %1681 = vst [vmem:[#allocation2 + $0x168] sm:$0xff] %v1489
  %1682 = vst [vmem:[#allocation2 + $0x170] sm:$0xff] %v1490
  %1683 = vst.msk [vmem:[#allocation2 + $0x178] sm:$0xff] %vm705, %v1491
  %1684 = vst [vmem:[#allocation2 + $0x180] sm:$0xff] %v1492
  %1685 = vst [vmem:[#allocation2 + $0x188] sm:$0xff] %v1493
  %1686 = vst.msk [vmem:[#allocation2 + $0x190] sm:$0xff] %vm705, %v1494
  %1687 = vst [vmem:[#allocation2 + $0x198] sm:$0xff] %v1495
  %1688 = vst [vmem:[#allocation2 + $0x1a0] sm:$0xff] %v1496
  %1689 = vst.msk [vmem:[#allocation2 + $0x1a8] sm:$0xff] %vm705, %v1497
  %1690 = vst [vmem:[#allocation2 + $0x1b0] sm:$0xff] %v1498
  %1691 = vst [vmem:[#allocation2 + $0x1b8] sm:$0xff] %v1499
  %1692 = vst.msk [vmem:[#allocation2 + $0x1c0] sm:$0xff] %vm705, %v1500
  %1693 = vst [vmem:[#allocation2 + $0x1c8] sm:$0xff] %v1501
  %1694 = vst [vmem:[#allocation2 + $0x1d0] sm:$0xff] %v1502
  %1695 = vst.msk [vmem:[#allocation2 + $0x1d8] sm:$0xff] %vm705, %v1503
  %1696 = vst [vmem:[#allocation2 + $0x1e0] sm:$0xff] %v1504
  %1697 = vst [vmem:[#allocation2 + $0x1e8] sm:$0xff] %v1505
  %1698 = vst.msk [vmem:[#allocation2 + $0x1f0] sm:$0xff] %vm705, %v1506
  %1699 = vst [vmem:[#allocation2 + $0x1f8] sm:$0xff] %v1507
  %1700 = vst [vmem:[#allocation2 + $0x200] sm:$0xff] %v1508
  %1701 = vst.msk [vmem:[#allocation2 + $0x208] sm:$0xff] %vm705, %v1509
  %1702 = vst [vmem:[#allocation2 + $0x210] sm:$0xff] %v1510
  %1703 = vst [vmem:[#allocation2 + $0x218] sm:$0xff] %v1511
  %1704 = vst.msk [vmem:[#allocation2 + $0x220] sm:$0xff] %vm705, %v1512
  %1705 = vst [vmem:[#allocation2 + $0x228] sm:$0xff] %v1513
  %1706 = vst [vmem:[#allocation2 + $0x230] sm:$0xff] %v1514
  %1707 = vst.msk [vmem:[#allocation2 + $0x238] sm:$0xff] %vm705, %v1515
  %1708 = vst [vmem:[#allocation2 + $0x240] sm:$0xff] %v1516
  %1709 = vst [vmem:[#allocation2 + $0x248] sm:$0xff] %v1517
  %1710 = vst.msk [vmem:[#allocation2 + $0x250] sm:$0xff] %vm705, %v1518
  %1711 = vst [vmem:[#allocation2 + $0x258] sm:$0xff] %v1519
  %1712 = vst [vmem:[#allocation2 + $0x260] sm:$0xff] %v1520
  %1713 = vst.msk [vmem:[#allocation2 + $0x268] sm:$0xff] %vm705, %v1521
  %1714 = vst [vmem:[#allocation2 + $0x270] sm:$0xff] %v1522
  %1715 = vst [vmem:[#allocation2 + $0x278] sm:$0xff] %v1523
  %1716 = vst.msk [vmem:[#allocation2 + $0x280] sm:$0xff] %vm705, %v1524
  %1717 = vst [vmem:[#allocation2 + $0x288] sm:$0xff] %v1525
  %1718 = vst [vmem:[#allocation2 + $0x290] sm:$0xff] %v1526
  %1719 = vst.msk [vmem:[#allocation2 + $0x298] sm:$0xff] %vm705, %v1527
  %1720 = vst [vmem:[#allocation2 + $0x2a0] sm:$0xff] %v1528
  %1721 = vst [vmem:[#allocation2 + $0x2a8] sm:$0xff] %v1529
  %1722 = vst.msk [vmem:[#allocation2 + $0x2b0] sm:$0xff] %vm705, %v1530
  %1723 = vst [vmem:[#allocation2 + $0x2b8] sm:$0xff] %v1531
  %1724 = vst [vmem:[#allocation2 + $0x2c0] sm:$0xff] %v1532
  %1725 = vst.msk [vmem:[#allocation2 + $0x2c8] sm:$0xff] %vm705, %v1533
  %1726 = vst [vmem:[#allocation2 + $0x2d0] sm:$0xff] %v1534
  %1727 = vst [vmem:[#allocation2 + $0x2d8] sm:$0xff] %v1535
  %1728 = vst.msk [vmem:[#allocation2 + $0x2e0] sm:$0xff] %vm705, %v1536
  %1729 = vst [vmem:[#allocation2 + $0x2e8] sm:$0xff] %v1537
  %1730 = vst [vmem:[#allocation2 + $0x2f0] sm:$0xff] %v1538
  %1731 = vst.msk [vmem:[#allocation2 + $0x2f8] sm:$0xff] %vm705, %v1539
  %1732 = vst [vmem:[#allocation2 + $0x300] sm:$0xff] %v1540
  %1733 = vst [vmem:[#allocation2 + $0x308] sm:$0xff] %v1541
  %1734 = vst.msk [vmem:[#allocation2 + $0x310] sm:$0xff] %vm705, %v1542
  %1735 = vst [vmem:[#allocation2 + $0x318] sm:$0xff] %v1543
  %1736 = vst [vmem:[#allocation2 + $0x320] sm:$0xff] %v1544
  %1737 = vst.msk [vmem:[#allocation2 + $0x328] sm:$0xff] %vm705, %v1545
  %1738 = vst [vmem:[#allocation2 + $0x330] sm:$0xff] %v1546
  %1739 = vst [vmem:[#allocation2 + $0x338] sm:$0xff] %v1547
  %1740 = vst.msk [vmem:[#allocation2 + $0x340] sm:$0xff] %vm705, %v1548
  %1741 = vst [vmem:[#allocation2 + $0x348] sm:$0xff] %v1549
  %1742 = vst [vmem:[#allocation2 + $0x350] sm:$0xff] %v1550
  %1743 = vst.msk [vmem:[#allocation2 + $0x358] sm:$0xff] %vm705, %v1551
  %1744 = vst [vmem:[#allocation2 + $0x360] sm:$0xff] %v1552
  %1745 = vst [vmem:[#allocation2 + $0x368] sm:$0xff] %v1553
  %1746 = vst.msk [vmem:[#allocation2 + $0x370] sm:$0xff] %vm705, %v1554
  %1747 = vst [vmem:[#allocation2 + $0x378] sm:$0xff] %v1555
  %1748 = vst [vmem:[#allocation2 + $0x380] sm:$0xff] %v1556
  %1749 = vst.msk [vmem:[#allocation2 + $0x388] sm:$0xff] %vm705, %v1557
  %1750 = vst [vmem:[#allocation2 + $0x390] sm:$0xff] %v1558
  %1751 = vst [vmem:[#allocation2 + $0x398] sm:$0xff] %v1559
  %1752 = vst.msk [vmem:[#allocation2 + $0x3a0] sm:$0xff] %vm705, %v1560
  %1753 = vst [vmem:[#allocation2 + $0x3a8] sm:$0xff] %v1561
  %1754 = vst [vmem:[#allocation2 + $0x3b0] sm:$0xff] %v1562
  %1755 = vst.msk [vmem:[#allocation2 + $0x3b8] sm:$0xff] %vm705, %v1563
  %1756 = vst [vmem:[#allocation2 + $0x3c0] sm:$0xff] %v1564
  %1757 = vst [vmem:[#allocation2 + $0x3c8] sm:$0xff] %v1565
  %1758 = vst.msk [vmem:[#allocation2 + $0x3d0] sm:$0xff] %vm705, %v1566
  %1759 = vst [vmem:[#allocation2 + $0x3d8] sm:$0xff] %v1567
  %1760 = vst [vmem:[#allocation2 + $0x3e0] sm:$0xff] %v1568
  %1761 = vst.msk [vmem:[#allocation2 + $0x3e8] sm:$0xff] %vm705, %v1569
  %1762 = vst [vmem:[#allocation2 + $0x3f0] sm:$0xff] %v1570
  %1763 = vst [vmem:[#allocation2 + $0x3f8] sm:$0xff] %v1571
  %1764 = vst.msk [vmem:[#allocation2 + $0x400] sm:$0xff] %vm705, %v1572
  %1765 = vst [vmem:[#allocation2 + $0x408] sm:$0xff] %v1573
  %1766 = vst [vmem:[#allocation2 + $0x410] sm:$0xff] %v1574
  %1767 = vst.msk [vmem:[#allocation2 + $0x418] sm:$0xff] %vm705, %v1575
  %1768 = vst [vmem:[#allocation2 + $0x420] sm:$0xff] %v1576
  %1769 = vst [vmem:[#allocation2 + $0x428] sm:$0xff] %v1577
  %1770 = vst.msk [vmem:[#allocation2 + $0x430] sm:$0xff] %vm705, %v1578
  %1771 = vst [vmem:[#allocation2 + $0x438] sm:$0xff] %v1579
  %1772 = vst [vmem:[#allocation2 + $0x440] sm:$0xff] %v1580
  %1773 = vst.msk [vmem:[#allocation2 + $0x448] sm:$0xff] %vm705, %v1581
  %1774 = vst [vmem:[#allocation2 + $0x450] sm:$0xff] %v1582
  %1775 = vst [vmem:[#allocation2 + $0x458] sm:$0xff] %v1583
  %1776 = vst.msk [vmem:[#allocation2 + $0x460] sm:$0xff] %vm705, %v1584
  %1777 = vst [vmem:[#allocation2 + $0x468] sm:$0xff] %v1585
  %1778 = vst [vmem:[#allocation2 + $0x470] sm:$0xff] %v1586
  %1779 = vst.msk [vmem:[#allocation2 + $0x478] sm:$0xff] %vm705, %v1587
  %1780 = vst [vmem:[#allocation2 + $0x480] sm:$0xff] %v1588
  %1781 = vst [vmem:[#allocation2 + $0x488] sm:$0xff] %v1589
  %1782 = vst.msk [vmem:[#allocation2 + $0x490] sm:$0xff] %vm705, %v1590
  %1783 = vst [vmem:[#allocation2 + $0x498] sm:$0xff] %v1591
  %1784 = vst [vmem:[#allocation2 + $0x4a0] sm:$0xff] %v1592
  %1785 = vst.msk [vmem:[#allocation2 + $0x4a8] sm:$0xff] %vm705, %v1593
  %1786 = vst [vmem:[#allocation2 + $0x4b0] sm:$0xff] %v1594
  %1787 = vst [vmem:[#allocation2 + $0x4b8] sm:$0xff] %v1595
  %1788 = vst.msk [vmem:[#allocation2 + $0x4c0] sm:$0xff] %vm705, %v1596
  %1789 = vst [vmem:[#allocation2 + $0x4c8] sm:$0xff] %v1597
  %1790 = vst [vmem:[#allocation2 + $0x4d0] sm:$0xff] %v1598
  %1791 = vst.msk [vmem:[#allocation2 + $0x4d8] sm:$0xff] %vm705, %v1599
  %1792 = vst [vmem:[#allocation2 + $0x4e0] sm:$0xff] %v1600
  %1793 = vst [vmem:[#allocation2 + $0x4e8] sm:$0xff] %v1601
  %1794 = vst.msk [vmem:[#allocation2 + $0x4f0] sm:$0xff] %vm705, %v1602
  %1795 = vst [vmem:[#allocation2 + $0x4f8] sm:$0xff] %v1603
  %1796 = vst [vmem:[#allocation2 + $0x500] sm:$0xff] %v1604
  %1797 = vst.msk [vmem:[#allocation2 + $0x508] sm:$0xff] %vm705, %v1605
  %1798 = vst [vmem:[#allocation2 + $0x510] sm:$0xff] %v1606
  %1799 = vst [vmem:[#allocation2 + $0x518] sm:$0xff] %v1607
  %1800 = vst.msk [vmem:[#allocation2 + $0x520] sm:$0xff] %vm705, %v1608
  %1801 = vst [vmem:[#allocation2 + $0x528] sm:$0xff] %v1609
  %1802 = vst [vmem:[#allocation2 + $0x530] sm:$0xff] %v1610
  %1803 = vst.msk [vmem:[#allocation2 + $0x538] sm:$0xff] %vm705, %v1611
  %1804 = vst [vmem:[#allocation2 + $0x540] sm:$0xff] %v1612
  %1805 = vst [vmem:[#allocation2 + $0x548] sm:$0xff] %v1613
  %1806 = vst.msk [vmem:[#allocation2 + $0x550] sm:$0xff] %vm705, %v1614
  %1807 = vst [vmem:[#allocation2 + $0x558] sm:$0xff] %v1615
  %1808 = vst [vmem:[#allocation2 + $0x560] sm:$0xff] %v1616
  %1809 = vst.msk [vmem:[#allocation2 + $0x568] sm:$0xff] %vm705, %v1617
  %1810 = vst [vmem:[#allocation2 + $0x570] sm:$0xff] %v1618
  %1811 = vst [vmem:[#allocation2 + $0x578] sm:$0xff] %v1619
  %1812 = vst.msk [vmem:[#allocation2 + $0x580] sm:$0xff] %vm705, %v1620
  %1813 = vst [vmem:[#allocation2 + $0x588] sm:$0xff] %v1621
  %1814 = vst [vmem:[#allocation2 + $0x590] sm:$0xff] %v1622
  %1815 = vst.msk [vmem:[#allocation2 + $0x598] sm:$0xff] %vm705, %v1623
  %1816 = vst [vmem:[#allocation2 + $0x5a0] sm:$0xff] %v1624
  %1817 = vst [vmem:[#allocation2 + $0x5a8] sm:$0xff] %v1625
  %1818 = vst.msk [vmem:[#allocation2 + $0x5b0] sm:$0xff] %vm705, %v1626
  %1819 = vst [vmem:[#allocation2 + $0x5b8] sm:$0xff] %v1627
  %1820 = vst [vmem:[#allocation2 + $0x5c0] sm:$0xff] %v1628
  %1821 = vst.msk [vmem:[#allocation2 + $0x5c8] sm:$0xff] %vm705, %v1629
  %1822 = vst [vmem:[#allocation2 + $0x5d0] sm:$0xff] %v1630
  %1823 = vst [vmem:[#allocation2 + $0x5d8] sm:$0xff] %v1631
  %1824 = vst.msk [vmem:[#allocation2 + $0x5e0] sm:$0xff] %vm705, %v1632
  %1825 = vst [vmem:[#allocation2 + $0x5e8] sm:$0xff] %v1633
  %1826 = vst [vmem:[#allocation2 + $0x5f0] sm:$0xff] %v1634
  %1827 = vst.msk [vmem:[#allocation2 + $0x5f8] sm:$0xff] %vm705, %v1635
  // Predicated region
  $region14: #{tpu_custom_call.1} parent=0 // pred_check
    %p1828 = pneg %p12
  $region15: #{tpu_custom_call.1} parent=0 // pred_check_branch
    %1830 = sbr.rel (%p1828) target = $region17
  $region16: #{tpu_custom_call.1} parent=0 // pred_region
    %v1831 = vld [vmem:[#allocation2] sm:$0xff]
    %v1832 = vld [vmem:[#allocation2 + $0x8] sm:$0xff]
    %v1833 = vld [vmem:[#allocation2 + $0x10] sm:$0xff]
    %v1834 = vld [vmem:[#allocation2 + $0x18] sm:$0xff]
    %v1835 = vld [vmem:[#allocation2 + $0x20] sm:$0xff]
    %v1836 = vld [vmem:[#allocation2 + $0x28] sm:$0xff]
    %v1837 = vld [vmem:[#allocation2 + $0x30] sm:$0xff]
    %v1838 = vld [vmem:[#allocation2 + $0x38] sm:$0xff]
    %v1839 = vld [vmem:[#allocation2 + $0x40] sm:$0xff]
    %v1840 = vld [vmem:[#allocation2 + $0x48] sm:$0xff]
    %v1841 = vld [vmem:[#allocation2 + $0x50] sm:$0xff]
    %v1842 = vld [vmem:[#allocation2 + $0x58] sm:$0xff]
    %v1843 = vld [vmem:[#allocation2 + $0x60] sm:$0xff]
    %v1844 = vld [vmem:[#allocation2 + $0x68] sm:$0xff]
    %v1845 = vld [vmem:[#allocation2 + $0x70] sm:$0xff]
    %v1846 = vld [vmem:[#allocation2 + $0x78] sm:$0xff]
    %v1847 = vld [vmem:[#allocation2 + $0x80] sm:$0xff]
    %v1848 = vld [vmem:[#allocation2 + $0x88] sm:$0xff]
    %v1849 = vld [vmem:[#allocation2 + $0x90] sm:$0xff]
    %v1850 = vld [vmem:[#allocation2 + $0x98] sm:$0xff]
    %v1851 = vld [vmem:[#allocation2 + $0xa0] sm:$0xff]
    %v1852 = vld [vmem:[#allocation2 + $0xa8] sm:$0xff]
    %v1853 = vld [vmem:[#allocation2 + $0xb0] sm:$0xff]
    %v1854 = vld [vmem:[#allocation2 + $0xb8] sm:$0xff]
    %v1855 = vld [vmem:[#allocation2 + $0xc0] sm:$0xff]
    %v1856 = vld [vmem:[#allocation2 + $0xc8] sm:$0xff]
    %v1857 = vld [vmem:[#allocation2 + $0xd0] sm:$0xff]
    %v1858 = vld [vmem:[#allocation2 + $0xd8] sm:$0xff]
    %v1859 = vld [vmem:[#allocation2 + $0xe0] sm:$0xff]
    %v1860 = vld [vmem:[#allocation2 + $0xe8] sm:$0xff]
    %v1861 = vld [vmem:[#allocation2 + $0xf0] sm:$0xff]
    %v1862 = vld [vmem:[#allocation2 + $0xf8] sm:$0xff]
    %v1863 = vld [vmem:[#allocation2 + $0x100] sm:$0xff]
    %v1864 = vld [vmem:[#allocation2 + $0x108] sm:$0xff]
    %v1865 = vld [vmem:[#allocation2 + $0x110] sm:$0xff]
    %v1866 = vld [vmem:[#allocation2 + $0x118] sm:$0xff]
    %v1867 = vld [vmem:[#allocation2 + $0x120] sm:$0xff]
    %v1868 = vld [vmem:[#allocation2 + $0x128] sm:$0xff]
    %v1869 = vld [vmem:[#allocation2 + $0x130] sm:$0xff]
    %v1870 = vld [vmem:[#allocation2 + $0x138] sm:$0xff]
    %v1871 = vld [vmem:[#allocation2 + $0x140] sm:$0xff]
    %v1872 = vld [vmem:[#allocation2 + $0x148] sm:$0xff]
    %v1873 = vld [vmem:[#allocation2 + $0x150] sm:$0xff]
    %v1874 = vld [vmem:[#allocation2 + $0x158] sm:$0xff]
    %v1875 = vld [vmem:[#allocation2 + $0x160] sm:$0xff]
    %v1876 = vld [vmem:[#allocation2 + $0x168] sm:$0xff]
    %v1877 = vld [vmem:[#allocation2 + $0x170] sm:$0xff]
    %v1878 = vld [vmem:[#allocation2 + $0x178] sm:$0xff]
    %v1879 = vld [vmem:[#allocation2 + $0x180] sm:$0xff]
    %v1880 = vld [vmem:[#allocation2 + $0x188] sm:$0xff]
    %v1881 = vld [vmem:[#allocation2 + $0x190] sm:$0xff]
    %v1882 = vld [vmem:[#allocation2 + $0x198] sm:$0xff]
    %v1883 = vld [vmem:[#allocation2 + $0x1a0] sm:$0xff]
    %v1884 = vld [vmem:[#allocation2 + $0x1a8] sm:$0xff]
    %v1885 = vld [vmem:[#allocation2 + $0x1b0] sm:$0xff]
    %v1886 = vld [vmem:[#allocation2 + $0x1b8] sm:$0xff]
    %v1887 = vld [vmem:[#allocation2 + $0x1c0] sm:$0xff]
    %v1888 = vld [vmem:[#allocation2 + $0x1c8] sm:$0xff]
    %v1889 = vld [vmem:[#allocation2 + $0x1d0] sm:$0xff]
    %v1890 = vld [vmem:[#allocation2 + $0x1d8] sm:$0xff]
    %v1891 = vld [vmem:[#allocation2 + $0x1e0] sm:$0xff]
    %v1892 = vld [vmem:[#allocation2 + $0x1e8] sm:$0xff]
    %v1893 = vld [vmem:[#allocation2 + $0x1f0] sm:$0xff]
    %v1894 = vld [vmem:[#allocation2 + $0x1f8] sm:$0xff]
    %v1895 = vld [vmem:[#allocation2 + $0x200] sm:$0xff]
    %v1896 = vld [vmem:[#allocation2 + $0x208] sm:$0xff]
    %v1897 = vld [vmem:[#allocation2 + $0x210] sm:$0xff]
    %v1898 = vld [vmem:[#allocation2 + $0x218] sm:$0xff]
    %v1899 = vld [vmem:[#allocation2 + $0x220] sm:$0xff]
    %v1900 = vld [vmem:[#allocation2 + $0x228] sm:$0xff]
    %v1901 = vld [vmem:[#allocation2 + $0x230] sm:$0xff]
    %v1902 = vld [vmem:[#allocation2 + $0x238] sm:$0xff]
    %v1903 = vld [vmem:[#allocation2 + $0x240] sm:$0xff]
    %v1904 = vld [vmem:[#allocation2 + $0x248] sm:$0xff]
    %v1905 = vld [vmem:[#allocation2 + $0x250] sm:$0xff]
    %v1906 = vld [vmem:[#allocation2 + $0x258] sm:$0xff]
    %v1907 = vld [vmem:[#allocation2 + $0x260] sm:$0xff]
    %v1908 = vld [vmem:[#allocation2 + $0x268] sm:$0xff]
    %v1909 = vld [vmem:[#allocation2 + $0x270] sm:$0xff]
    %v1910 = vld [vmem:[#allocation2 + $0x278] sm:$0xff]
    %v1911 = vld [vmem:[#allocation2 + $0x280] sm:$0xff]
    %v1912 = vld [vmem:[#allocation2 + $0x288] sm:$0xff]
    %v1913 = vld [vmem:[#allocation2 + $0x290] sm:$0xff]
    %v1914 = vld [vmem:[#allocation2 + $0x298] sm:$0xff]
    %v1915 = vld [vmem:[#allocation2 + $0x2a0] sm:$0xff]
    %v1916 = vld [vmem:[#allocation2 + $0x2a8] sm:$0xff]
    %v1917 = vld [vmem:[#allocation2 + $0x2b0] sm:$0xff]
    %v1918 = vld [vmem:[#allocation2 + $0x2b8] sm:$0xff]
    %v1919 = vld [vmem:[#allocation2 + $0x2c0] sm:$0xff]
    %v1920 = vld [vmem:[#allocation2 + $0x2c8] sm:$0xff]
    %v1921 = vld [vmem:[#allocation2 + $0x2d0] sm:$0xff]
    %v1922 = vld [vmem:[#allocation2 + $0x2d8] sm:$0xff]
    %v1923 = vld [vmem:[#allocation2 + $0x2e0] sm:$0xff]
    %v1924 = vld [vmem:[#allocation2 + $0x2e8] sm:$0xff]
    %v1925 = vld [vmem:[#allocation2 + $0x2f0] sm:$0xff]
    %v1926 = vld [vmem:[#allocation2 + $0x2f8] sm:$0xff]
    %v1927 = vld [vmem:[#allocation2 + $0x300] sm:$0xff]
    %v1928 = vld [vmem:[#allocation2 + $0x308] sm:$0xff]
    %v1929 = vld [vmem:[#allocation2 + $0x310] sm:$0xff]
    %v1930 = vld [vmem:[#allocation2 + $0x318] sm:$0xff]
    %v1931 = vld [vmem:[#allocation2 + $0x320] sm:$0xff]
    %v1932 = vld [vmem:[#allocation2 + $0x328] sm:$0xff]
    %v1933 = vld [vmem:[#allocation2 + $0x330] sm:$0xff]
    %v1934 = vld [vmem:[#allocation2 + $0x338] sm:$0xff]
    %v1935 = vld [vmem:[#allocation2 + $0x340] sm:$0xff]
    %v1936 = vld [vmem:[#allocation2 + $0x348] sm:$0xff]
    %v1937 = vld [vmem:[#allocation2 + $0x350] sm:$0xff]
    %v1938 = vld [vmem:[#allocation2 + $0x358] sm:$0xff]
    %v1939 = vld [vmem:[#allocation2 + $0x360] sm:$0xff]
    %v1940 = vld [vmem:[#allocation2 + $0x368] sm:$0xff]
    %v1941 = vld [vmem:[#allocation2 + $0x370] sm:$0xff]
    %v1942 = vld [vmem:[#allocation2 + $0x378] sm:$0xff]
    %v1943 = vld [vmem:[#allocation2 + $0x380] sm:$0xff]
    %v1944 = vld [vmem:[#allocation2 + $0x388] sm:$0xff]
    %v1945 = vld [vmem:[#allocation2 + $0x390] sm:$0xff]
    %v1946 = vld [vmem:[#allocation2 + $0x398] sm:$0xff]
    %v1947 = vld [vmem:[#allocation2 + $0x3a0] sm:$0xff]
    %v1948 = vld [vmem:[#allocation2 + $0x3a8] sm:$0xff]
    %v1949 = vld [vmem:[#allocation2 + $0x3b0] sm:$0xff]
    %v1950 = vld [vmem:[#allocation2 + $0x3b8] sm:$0xff]
    %v1951 = vld [vmem:[#allocation2 + $0x3c0] sm:$0xff]
    %v1952 = vld [vmem:[#allocation2 + $0x3c8] sm:$0xff]
    %v1953 = vld [vmem:[#allocation2 + $0x3d0] sm:$0xff]
    %v1954 = vld [vmem:[#allocation2 + $0x3d8] sm:$0xff]
    %v1955 = vld [vmem:[#allocation2 + $0x3e0] sm:$0xff]
    %v1956 = vld [vmem:[#allocation2 + $0x3e8] sm:$0xff]
    %v1957 = vld [vmem:[#allocation2 + $0x3f0] sm:$0xff]
    %v1958 = vld [vmem:[#allocation2 + $0x3f8] sm:$0xff]
    %v1959 = vld [vmem:[#allocation2 + $0x400] sm:$0xff]
    %v1960 = vld [vmem:[#allocation2 + $0x408] sm:$0xff]
    %v1961 = vld [vmem:[#allocation2 + $0x410] sm:$0xff]
    %v1962 = vld [vmem:[#allocation2 + $0x418] sm:$0xff]
    %v1963 = vld [vmem:[#allocation2 + $0x420] sm:$0xff]
    %v1964 = vld [vmem:[#allocation2 + $0x428] sm:$0xff]
    %v1965 = vld [vmem:[#allocation2 + $0x430] sm:$0xff]
    %v1966 = vld [vmem:[#allocation2 + $0x438] sm:$0xff]
    %v1967 = vld [vmem:[#allocation2 + $0x440] sm:$0xff]
    %v1968 = vld [vmem:[#allocation2 + $0x448] sm:$0xff]
    %v1969 = vld [vmem:[#allocation2 + $0x450] sm:$0xff]
    %v1970 = vld [vmem:[#allocation2 + $0x458] sm:$0xff]
    %v1971 = vld [vmem:[#allocation2 + $0x460] sm:$0xff]
    %v1972 = vld [vmem:[#allocation2 + $0x468] sm:$0xff]
    %v1973 = vld [vmem:[#allocation2 + $0x470] sm:$0xff]
    %v1974 = vld [vmem:[#allocation2 + $0x478] sm:$0xff]
    %v1975 = vld [vmem:[#allocation2 + $0x480] sm:$0xff]
    %v1976 = vld [vmem:[#allocation2 + $0x488] sm:$0xff]
    %v1977 = vld [vmem:[#allocation2 + $0x490] sm:$0xff]
    %v1978 = vld [vmem:[#allocation2 + $0x498] sm:$0xff]
    %v1979 = vld [vmem:[#allocation2 + $0x4a0] sm:$0xff]
    %v1980 = vld [vmem:[#allocation2 + $0x4a8] sm:$0xff]
    %v1981 = vld [vmem:[#allocation2 + $0x4b0] sm:$0xff]
    %v1982 = vld [vmem:[#allocation2 + $0x4b8] sm:$0xff]
    %v1983 = vld [vmem:[#allocation2 + $0x4c0] sm:$0xff]
    %v1984 = vld [vmem:[#allocation2 + $0x4c8] sm:$0xff]
    %v1985 = vld [vmem:[#allocation2 + $0x4d0] sm:$0xff]
    %v1986 = vld [vmem:[#allocation2 + $0x4d8] sm:$0xff]
    %v1987 = vld [vmem:[#allocation2 + $0x4e0] sm:$0xff]
    %v1988 = vld [vmem:[#allocation2 + $0x4e8] sm:$0xff]
    %v1989 = vld [vmem:[#allocation2 + $0x4f0] sm:$0xff]
    %v1990 = vld [vmem:[#allocation2 + $0x4f8] sm:$0xff]
    %v1991 = vld [vmem:[#allocation2 + $0x500] sm:$0xff]
    %v1992 = vld [vmem:[#allocation2 + $0x508] sm:$0xff]
    %v1993 = vld [vmem:[#allocation2 + $0x510] sm:$0xff]
    %v1994 = vld [vmem:[#allocation2 + $0x518] sm:$0xff]
    %v1995 = vld [vmem:[#allocation2 + $0x520] sm:$0xff]
    %v1996 = vld [vmem:[#allocation2 + $0x528] sm:$0xff]
    %v1997 = vld [vmem:[#allocation2 + $0x530] sm:$0xff]
    %v1998 = vld [vmem:[#allocation2 + $0x538] sm:$0xff]
    %v1999 = vld [vmem:[#allocation2 + $0x540] sm:$0xff]
    %v2000 = vld [vmem:[#allocation2 + $0x548] sm:$0xff]
    %v2001 = vld [vmem:[#allocation2 + $0x550] sm:$0xff]
    %v2002 = vld [vmem:[#allocation2 + $0x558] sm:$0xff]
    %v2003 = vld [vmem:[#allocation2 + $0x560] sm:$0xff]
    %v2004 = vld [vmem:[#allocation2 + $0x568] sm:$0xff]
    %v2005 = vld [vmem:[#allocation2 + $0x570] sm:$0xff]
    %v2006 = vld [vmem:[#allocation2 + $0x578] sm:$0xff]
    %v2007 = vld [vmem:[#allocation2 + $0x580] sm:$0xff]
    %v2008 = vld [vmem:[#allocation2 + $0x588] sm:$0xff]
    %v2009 = vld [vmem:[#allocation2 + $0x590] sm:$0xff]
    %v2010 = vld [vmem:[#allocation2 + $0x598] sm:$0xff]
    %v2011 = vld [vmem:[#allocation2 + $0x5a0] sm:$0xff]
    %v2012 = vld [vmem:[#allocation2 + $0x5a8] sm:$0xff]
    %v2013 = vld [vmem:[#allocation2 + $0x5b0] sm:$0xff]
    %v2014 = vld [vmem:[#allocation2 + $0x5b8] sm:$0xff]
    %v2015 = vld [vmem:[#allocation2 + $0x5c0] sm:$0xff]
    %v2016 = vld [vmem:[#allocation2 + $0x5c8] sm:$0xff]
    %v2017 = vld [vmem:[#allocation2 + $0x5d0] sm:$0xff]
    %v2018 = vld [vmem:[#allocation2 + $0x5d8] sm:$0xff]
    %v2019 = vld [vmem:[#allocation2 + $0x5e0] sm:$0xff]
    %v2020 = vld [vmem:[#allocation2 + $0x5e8] sm:$0xff]
    %v2021 = vld [vmem:[#allocation2 + $0x5f0] sm:$0xff]
    %v2022 = vld [vmem:[#allocation2 + $0x5f8] sm:$0xff]
    %v2023 = vpack.c.bf16 %v1834, %v1831
    %v2024 = vpack.c.bf16 %v1835, %v1832
    %v2025 = vpack.c.bf16 %v1836, %v1833
    %v2026 = vpack.c.bf16 %v1840, %v1837
    %v2027 = vpack.c.bf16 %v1841, %v1838
    %v2028 = vpack.c.bf16 %v1842, %v1839
    %v2029 = vpack.c.bf16 %v1846, %v1843
    %v2030 = vpack.c.bf16 %v1847, %v1844
    %v2031 = vpack.c.bf16 %v1848, %v1845
    %v2032 = vpack.c.bf16 %v1852, %v1849
    %v2033 = vpack.c.bf16 %v1853, %v1850
    %v2034 = vpack.c.bf16 %v1854, %v1851
    %v2035 = vpack.c.bf16 %v1858, %v1855
    %v2036 = vpack.c.bf16 %v1859, %v1856
    %v2037 = vpack.c.bf16 %v1860, %v1857
    %v2038 = vpack.c.bf16 %v1864, %v1861
    %v2039 = vpack.c.bf16 %v1865, %v1862
    %v2040 = vpack.c.bf16 %v1866, %v1863
    %v2041 = vpack.c.bf16 %v1870, %v1867
    %v2042 = vpack.c.bf16 %v1871, %v1868
    %v2043 = vpack.c.bf16 %v1872, %v1869
    %v2044 = vpack.c.bf16 %v1876, %v1873
    %v2045 = vpack.c.bf16 %v1877, %v1874
    %v2046 = vpack.c.bf16 %v1878, %v1875
    %v2047 = vpack.c.bf16 %v1882, %v1879
    %v2048 = vpack.c.bf16 %v1883, %v1880
    %v2049 = vpack.c.bf16 %v1884, %v1881
    %v2050 = vpack.c.bf16 %v1888, %v1885
    %v2051 = vpack.c.bf16 %v1889, %v1886
    %v2052 = vpack.c.bf16 %v1890, %v1887
    %v2053 = vpack.c.bf16 %v1894, %v1891
    %v2054 = vpack.c.bf16 %v1895, %v1892
    %v2055 = vpack.c.bf16 %v1896, %v1893
    %v2056 = vpack.c.bf16 %v1900, %v1897
    %v2057 = vpack.c.bf16 %v1901, %v1898
    %v2058 = vpack.c.bf16 %v1902, %v1899
    %v2059 = vpack.c.bf16 %v1906, %v1903
    %v2060 = vpack.c.bf16 %v1907, %v1904
    %v2061 = vpack.c.bf16 %v1908, %v1905
    %v2062 = vpack.c.bf16 %v1912, %v1909
    %v2063 = vpack.c.bf16 %v1913, %v1910
    %v2064 = vpack.c.bf16 %v1914, %v1911
    %v2065 = vpack.c.bf16 %v1918, %v1915
    %v2066 = vpack.c.bf16 %v1919, %v1916
    %v2067 = vpack.c.bf16 %v1920, %v1917
    %v2068 = vpack.c.bf16 %v1924, %v1921
    %v2069 = vpack.c.bf16 %v1925, %v1922
    %v2070 = vpack.c.bf16 %v1926, %v1923
    %v2071 = vpack.c.bf16 %v1930, %v1927
    %v2072 = vpack.c.bf16 %v1931, %v1928
    %v2073 = vpack.c.bf16 %v1932, %v1929
    %v2074 = vpack.c.bf16 %v1936, %v1933
    %v2075 = vpack.c.bf16 %v1937, %v1934
    %v2076 = vpack.c.bf16 %v1938, %v1935
    %v2077 = vpack.c.bf16 %v1942, %v1939
    %v2078 = vpack.c.bf16 %v1943, %v1940
    %v2079 = vpack.c.bf16 %v1944, %v1941
    %v2080 = vpack.c.bf16 %v1948, %v1945
    %v2081 = vpack.c.bf16 %v1949, %v1946
    %v2082 = vpack.c.bf16 %v1950, %v1947
    %v2083 = vpack.c.bf16 %v1954, %v1951
    %v2084 = vpack.c.bf16 %v1955, %v1952
    %v2085 = vpack.c.bf16 %v1956, %v1953
    %v2086 = vpack.c.bf16 %v1960, %v1957
    %v2087 = vpack.c.bf16 %v1961, %v1958
    %v2088 = vpack.c.bf16 %v1962, %v1959
    %v2089 = vpack.c.bf16 %v1966, %v1963
    %v2090 = vpack.c.bf16 %v1967, %v1964
    %v2091 = vpack.c.bf16 %v1968, %v1965
    %v2092 = vpack.c.bf16 %v1972, %v1969
    %v2093 = vpack.c.bf16 %v1973, %v1970
    %v2094 = vpack.c.bf16 %v1974, %v1971
    %v2095 = vpack.c.bf16 %v1978, %v1975
    %v2096 = vpack.c.bf16 %v1979, %v1976
    %v2097 = vpack.c.bf16 %v1980, %v1977
    %v2098 = vpack.c.bf16 %v1984, %v1981
    %v2099 = vpack.c.bf16 %v1985, %v1982
    %v2100 = vpack.c.bf16 %v1986, %v1983
    %v2101 = vpack.c.bf16 %v1990, %v1987
    %v2102 = vpack.c.bf16 %v1991, %v1988
    %v2103 = vpack.c.bf16 %v1992, %v1989
    %v2104 = vpack.c.bf16 %v1996, %v1993
    %v2105 = vpack.c.bf16 %v1997, %v1994
    %v2106 = vpack.c.bf16 %v1998, %v1995
    %v2107 = vpack.c.bf16 %v2002, %v1999
    %v2108 = vpack.c.bf16 %v2003, %v2000
    %v2109 = vpack.c.bf16 %v2004, %v2001
    %v2110 = vpack.c.bf16 %v2008, %v2005
    %v2111 = vpack.c.bf16 %v2009, %v2006
    %v2112 = vpack.c.bf16 %v2010, %v2007
    %v2113 = vpack.c.bf16 %v2014, %v2011
    %v2114 = vpack.c.bf16 %v2015, %v2012
    %v2115 = vpack.c.bf16 %v2016, %v2013
    %v2116 = vpack.c.bf16 %v2020, %v2017
    %v2117 = vpack.c.bf16 %v2021, %v2018
    %v2118 = vpack.c.bf16 %v2022, %v2019
    %v2215 = vunpack.c.l.b16 %v2023
    %v2216 = vunpack.c.l.b16 %v2024
    %v2217 = vunpack.c.l.b16 %v2025
    %v2218 = vunpack.c.h.b16 %v2023
    %v2219 = vunpack.c.h.b16 %v2024
    %v2220 = vunpack.c.h.b16 %v2025
    %v2221 = vunpack.c.l.b16 %v2026
    %v2222 = vunpack.c.l.b16 %v2027
    %v2223 = vunpack.c.l.b16 %v2028
    %v2224 = vunpack.c.h.b16 %v2026
    %v2225 = vunpack.c.h.b16 %v2027
    %v2226 = vunpack.c.h.b16 %v2028
    %v2227 = vunpack.c.l.b16 %v2029
    %v2228 = vunpack.c.l.b16 %v2030
    %v2229 = vunpack.c.l.b16 %v2031
    %v2230 = vunpack.c.h.b16 %v2029
    %v2231 = vunpack.c.h.b16 %v2030
    %v2232 = vunpack.c.h.b16 %v2031
    %v2233 = vunpack.c.l.b16 %v2032
    %v2234 = vunpack.c.l.b16 %v2033
    %v2235 = vunpack.c.l.b16 %v2034
    %v2236 = vunpack.c.h.b16 %v2032
    %v2237 = vunpack.c.h.b16 %v2033
    %v2238 = vunpack.c.h.b16 %v2034
    %v2239 = vunpack.c.l.b16 %v2035
    %v2240 = vunpack.c.l.b16 %v2036
    %v2241 = vunpack.c.l.b16 %v2037
    %v2242 = vunpack.c.h.b16 %v2035
    %v2243 = vunpack.c.h.b16 %v2036
    %v2244 = vunpack.c.h.b16 %v2037
    %v2245 = vunpack.c.l.b16 %v2038
    %v2246 = vunpack.c.l.b16 %v2039
    %v2247 = vunpack.c.l.b16 %v2040
    %v2248 = vunpack.c.h.b16 %v2038
    %v2249 = vunpack.c.h.b16 %v2039
    %v2250 = vunpack.c.h.b16 %v2040
    %v2251 = vunpack.c.l.b16 %v2041
    %v2252 = vunpack.c.l.b16 %v2042
    %v2253 = vunpack.c.l.b16 %v2043
    %v2254 = vunpack.c.h.b16 %v2041
    %v2255 = vunpack.c.h.b16 %v2042
    %v2256 = vunpack.c.h.b16 %v2043
    %v2257 = vunpack.c.l.b16 %v2044
    %v2258 = vunpack.c.l.b16 %v2045
    %v2259 = vunpack.c.l.b16 %v2046
    %v2260 = vunpack.c.h.b16 %v2044
    %v2261 = vunpack.c.h.b16 %v2045
    %v2262 = vunpack.c.h.b16 %v2046
    %v2263 = vunpack.c.l.b16 %v2047
    %v2264 = vunpack.c.l.b16 %v2048
    %v2265 = vunpack.c.l.b16 %v2049
    %v2266 = vunpack.c.h.b16 %v2047
    %v2267 = vunpack.c.h.b16 %v2048
    %v2268 = vunpack.c.h.b16 %v2049
    %v2269 = vunpack.c.l.b16 %v2050
    %v2270 = vunpack.c.l.b16 %v2051
    %v2271 = vunpack.c.l.b16 %v2052
    %v2272 = vunpack.c.h.b16 %v2050
    %v2273 = vunpack.c.h.b16 %v2051
    %v2274 = vunpack.c.h.b16 %v2052
    %v2275 = vunpack.c.l.b16 %v2053
    %v2276 = vunpack.c.l.b16 %v2054
    %v2277 = vunpack.c.l.b16 %v2055
    %v2278 = vunpack.c.h.b16 %v2053
    %v2279 = vunpack.c.h.b16 %v2054
    %v2280 = vunpack.c.h.b16 %v2055
    %v2281 = vunpack.c.l.b16 %v2056
    %v2282 = vunpack.c.l.b16 %v2057
    %v2283 = vunpack.c.l.b16 %v2058
    %v2284 = vunpack.c.h.b16 %v2056
    %v2285 = vunpack.c.h.b16 %v2057
    %v2286 = vunpack.c.h.b16 %v2058
    %v2287 = vunpack.c.l.b16 %v2059
    %v2288 = vunpack.c.l.b16 %v2060
    %v2289 = vunpack.c.l.b16 %v2061
    %v2290 = vunpack.c.h.b16 %v2059
    %v2291 = vunpack.c.h.b16 %v2060
    %v2292 = vunpack.c.h.b16 %v2061
    %v2293 = vunpack.c.l.b16 %v2062
    %v2294 = vunpack.c.l.b16 %v2063
    %v2295 = vunpack.c.l.b16 %v2064
    %v2296 = vunpack.c.h.b16 %v2062
    %v2297 = vunpack.c.h.b16 %v2063
    %v2298 = vunpack.c.h.b16 %v2064
    %v2299 = vunpack.c.l.b16 %v2065
    %v2300 = vunpack.c.l.b16 %v2066
    %v2301 = vunpack.c.l.b16 %v2067
    %v2302 = vunpack.c.h.b16 %v2065
    %v2303 = vunpack.c.h.b16 %v2066
    %v2304 = vunpack.c.h.b16 %v2067
    %v2305 = vunpack.c.l.b16 %v2068
    %v2306 = vunpack.c.l.b16 %v2069
    %v2307 = vunpack.c.l.b16 %v2070
    %v2308 = vunpack.c.h.b16 %v2068
    %v2309 = vunpack.c.h.b16 %v2069
    %v2310 = vunpack.c.h.b16 %v2070
    %v2311 = vunpack.c.l.b16 %v2071
    %v2312 = vunpack.c.l.b16 %v2072
    %v2313 = vunpack.c.l.b16 %v2073
    %v2314 = vunpack.c.h.b16 %v2071
    %v2315 = vunpack.c.h.b16 %v2072
    %v2316 = vunpack.c.h.b16 %v2073
    %v2317 = vunpack.c.l.b16 %v2074
    %v2318 = vunpack.c.l.b16 %v2075
    %v2319 = vunpack.c.l.b16 %v2076
    %v2320 = vunpack.c.h.b16 %v2074
    %v2321 = vunpack.c.h.b16 %v2075
    %v2322 = vunpack.c.h.b16 %v2076
    %v2323 = vunpack.c.l.b16 %v2077
    %v2324 = vunpack.c.l.b16 %v2078
    %v2325 = vunpack.c.l.b16 %v2079
    %v2326 = vunpack.c.h.b16 %v2077
    %v2327 = vunpack.c.h.b16 %v2078
    %v2328 = vunpack.c.h.b16 %v2079
    %v2329 = vunpack.c.l.b16 %v2080
    %v2330 = vunpack.c.l.b16 %v2081
    %v2331 = vunpack.c.l.b16 %v2082
    %v2332 = vunpack.c.h.b16 %v2080
    %v2333 = vunpack.c.h.b16 %v2081
    %v2334 = vunpack.c.h.b16 %v2082
    %v2335 = vunpack.c.l.b16 %v2083
    %v2336 = vunpack.c.l.b16 %v2084
    %v2337 = vunpack.c.l.b16 %v2085
    %v2338 = vunpack.c.h.b16 %v2083
    %v2339 = vunpack.c.h.b16 %v2084
    %v2340 = vunpack.c.h.b16 %v2085
    %v2341 = vunpack.c.l.b16 %v2086
    %v2342 = vunpack.c.l.b16 %v2087
    %v2343 = vunpack.c.l.b16 %v2088
    %v2344 = vunpack.c.h.b16 %v2086
    %v2345 = vunpack.c.h.b16 %v2087
    %v2346 = vunpack.c.h.b16 %v2088
    %v2347 = vunpack.c.l.b16 %v2089
    %v2348 = vunpack.c.l.b16 %v2090
    %v2349 = vunpack.c.l.b16 %v2091
    %v2350 = vunpack.c.h.b16 %v2089
    %v2351 = vunpack.c.h.b16 %v2090
    %v2352 = vunpack.c.h.b16 %v2091
    %v2353 = vunpack.c.l.b16 %v2092
    %v2354 = vunpack.c.l.b16 %v2093
    %v2355 = vunpack.c.l.b16 %v2094
    %v2356 = vunpack.c.h.b16 %v2092
    %v2357 = vunpack.c.h.b16 %v2093
    %v2358 = vunpack.c.h.b16 %v2094
    %v2359 = vunpack.c.l.b16 %v2095
    %v2360 = vunpack.c.l.b16 %v2096
    %v2361 = vunpack.c.l.b16 %v2097
    %v2362 = vunpack.c.h.b16 %v2095
    %v2363 = vunpack.c.h.b16 %v2096
    %v2364 = vunpack.c.h.b16 %v2097
    %v2365 = vunpack.c.l.b16 %v2098
    %v2366 = vunpack.c.l.b16 %v2099
    %v2367 = vunpack.c.l.b16 %v2100
    %v2368 = vunpack.c.h.b16 %v2098
    %v2369 = vunpack.c.h.b16 %v2099
    %v2370 = vunpack.c.h.b16 %v2100
    %v2371 = vunpack.c.l.b16 %v2101
    %v2372 = vunpack.c.l.b16 %v2102
    %v2373 = vunpack.c.l.b16 %v2103
    %v2374 = vunpack.c.h.b16 %v2101
    %v2375 = vunpack.c.h.b16 %v2102
    %v2376 = vunpack.c.h.b16 %v2103
    %v2377 = vunpack.c.l.b16 %v2104
    %v2378 = vunpack.c.l.b16 %v2105
    %v2379 = vunpack.c.l.b16 %v2106
    %v2380 = vunpack.c.h.b16 %v2104
    %v2381 = vunpack.c.h.b16 %v2105
    %v2382 = vunpack.c.h.b16 %v2106
    %v2383 = vunpack.c.l.b16 %v2107
    %v2384 = vunpack.c.l.b16 %v2108
    %v2385 = vunpack.c.l.b16 %v2109
    %v2386 = vunpack.c.h.b16 %v2107
    %v2387 = vunpack.c.h.b16 %v2108
    %v2388 = vunpack.c.h.b16 %v2109
    %v2389 = vunpack.c.l.b16 %v2110
    %v2390 = vunpack.c.l.b16 %v2111
    %v2391 = vunpack.c.l.b16 %v2112
    %v2392 = vunpack.c.h.b16 %v2110
    %v2393 = vunpack.c.h.b16 %v2111
    %v2394 = vunpack.c.h.b16 %v2112
    %v2395 = vunpack.c.l.b16 %v2113
    %v2396 = vunpack.c.l.b16 %v2114
    %v2397 = vunpack.c.l.b16 %v2115
    %v2398 = vunpack.c.h.b16 %v2113
    %v2399 = vunpack.c.h.b16 %v2114
    %v2400 = vunpack.c.h.b16 %v2115
    %v2401 = vunpack.c.l.b16 %v2116
    %v2402 = vunpack.c.l.b16 %v2117
    %v2403 = vunpack.c.l.b16 %v2118
    %v2404 = vunpack.c.h.b16 %v2116
    %v2405 = vunpack.c.h.b16 %v2117
    %v2406 = vunpack.c.h.b16 %v2118
    %v2407 = vpack.c.b16 %v2216, %v2215
    %v2408 = vpack.c.b16 %v2217, %v2217
    %v2409 = vpack.c.b16 %v2219, %v2218
    %v2410 = vpack.c.b16 %v2220, %v2220
    %v2411 = vpack.c.b16 %v2222, %v2221
    %v2412 = vpack.c.b16 %v2223, %v2223
    %v2413 = vpack.c.b16 %v2225, %v2224
    %v2414 = vpack.c.b16 %v2226, %v2226
    %v2415 = vpack.c.b16 %v2228, %v2227
    %v2416 = vpack.c.b16 %v2229, %v2229
    %v2417 = vpack.c.b16 %v2231, %v2230
    %v2418 = vpack.c.b16 %v2232, %v2232
    %v2419 = vpack.c.b16 %v2234, %v2233
    %v2420 = vpack.c.b16 %v2235, %v2235
    %v2421 = vpack.c.b16 %v2237, %v2236
    %v2422 = vpack.c.b16 %v2238, %v2238
    %v2423 = vpack.c.b16 %v2240, %v2239
    %v2424 = vpack.c.b16 %v2241, %v2241
    %v2425 = vpack.c.b16 %v2243, %v2242
    %v2426 = vpack.c.b16 %v2244, %v2244
    %v2427 = vpack.c.b16 %v2246, %v2245
    %v2428 = vpack.c.b16 %v2247, %v2247
    %v2429 = vpack.c.b16 %v2249, %v2248
    %v2430 = vpack.c.b16 %v2250, %v2250
    %v2431 = vpack.c.b16 %v2252, %v2251
    %v2432 = vpack.c.b16 %v2253, %v2253
    %v2433 = vpack.c.b16 %v2255, %v2254
    %v2434 = vpack.c.b16 %v2256, %v2256
    %v2435 = vpack.c.b16 %v2258, %v2257
    %v2436 = vpack.c.b16 %v2259, %v2259
    %v2437 = vpack.c.b16 %v2261, %v2260
    %v2438 = vpack.c.b16 %v2262, %v2262
    %v2439 = vpack.c.b16 %v2264, %v2263
    %v2440 = vpack.c.b16 %v2265, %v2265
    %v2441 = vpack.c.b16 %v2267, %v2266
    %v2442 = vpack.c.b16 %v2268, %v2268
    %v2443 = vpack.c.b16 %v2270, %v2269
    %v2444 = vpack.c.b16 %v2271, %v2271
    %v2445 = vpack.c.b16 %v2273, %v2272
    %v2446 = vpack.c.b16 %v2274, %v2274
    %v2447 = vpack.c.b16 %v2276, %v2275
    %v2448 = vpack.c.b16 %v2277, %v2277
    %v2449 = vpack.c.b16 %v2279, %v2278
    %v2450 = vpack.c.b16 %v2280, %v2280
    %v2451 = vpack.c.b16 %v2282, %v2281
    %v2452 = vpack.c.b16 %v2283, %v2283
    %v2453 = vpack.c.b16 %v2285, %v2284
    %v2454 = vpack.c.b16 %v2286, %v2286
    %v2455 = vpack.c.b16 %v2288, %v2287
    %v2456 = vpack.c.b16 %v2289, %v2289
    %v2457 = vpack.c.b16 %v2291, %v2290
    %v2458 = vpack.c.b16 %v2292, %v2292
    %v2459 = vpack.c.b16 %v2294, %v2293
    %v2460 = vpack.c.b16 %v2295, %v2295
    %v2461 = vpack.c.b16 %v2297, %v2296
    %v2462 = vpack.c.b16 %v2298, %v2298
    %v2463 = vpack.c.b16 %v2300, %v2299
    %v2464 = vpack.c.b16 %v2301, %v2301
    %v2465 = vpack.c.b16 %v2303, %v2302
    %v2466 = vpack.c.b16 %v2304, %v2304
    %v2467 = vpack.c.b16 %v2306, %v2305
    %v2468 = vpack.c.b16 %v2307, %v2307
    %v2469 = vpack.c.b16 %v2309, %v2308
    %v2470 = vpack.c.b16 %v2310, %v2310
    %v2471 = vpack.c.b16 %v2312, %v2311
    %v2472 = vpack.c.b16 %v2313, %v2313
    %v2473 = vpack.c.b16 %v2315, %v2314
    %v2474 = vpack.c.b16 %v2316, %v2316
    %v2475 = vpack.c.b16 %v2318, %v2317
    %v2476 = vpack.c.b16 %v2319, %v2319
    %v2477 = vpack.c.b16 %v2321, %v2320
    %v2478 = vpack.c.b16 %v2322, %v2322
    %v2479 = vpack.c.b16 %v2324, %v2323
    %v2480 = vpack.c.b16 %v2325, %v2325
    %v2481 = vpack.c.b16 %v2327, %v2326
    %v2482 = vpack.c.b16 %v2328, %v2328
    %v2483 = vpack.c.b16 %v2330, %v2329
    %v2484 = vpack.c.b16 %v2331, %v2331
    %v2485 = vpack.c.b16 %v2333, %v2332
    %v2486 = vpack.c.b16 %v2334, %v2334
    %v2487 = vpack.c.b16 %v2336, %v2335
    %v2488 = vpack.c.b16 %v2337, %v2337
    %v2489 = vpack.c.b16 %v2339, %v2338
    %v2490 = vpack.c.b16 %v2340, %v2340
    %v2491 = vpack.c.b16 %v2342, %v2341
    %v2492 = vpack.c.b16 %v2343, %v2343
    %v2493 = vpack.c.b16 %v2345, %v2344
    %v2494 = vpack.c.b16 %v2346, %v2346
    %v2495 = vpack.c.b16 %v2348, %v2347
    %v2496 = vpack.c.b16 %v2349, %v2349
    %v2497 = vpack.c.b16 %v2351, %v2350
    %v2498 = vpack.c.b16 %v2352, %v2352
    %v2499 = vpack.c.b16 %v2354, %v2353
    %v2500 = vpack.c.b16 %v2355, %v2355
    %v2501 = vpack.c.b16 %v2357, %v2356
    %v2502 = vpack.c.b16 %v2358, %v2358
    %v2503 = vpack.c.b16 %v2360, %v2359
    %v2504 = vpack.c.b16 %v2361, %v2361
    %v2505 = vpack.c.b16 %v2363, %v2362
    %v2506 = vpack.c.b16 %v2364, %v2364
    %v2507 = vpack.c.b16 %v2366, %v2365
    %v2508 = vpack.c.b16 %v2367, %v2367
    %v2509 = vpack.c.b16 %v2369, %v2368
    %v2510 = vpack.c.b16 %v2370, %v2370
    %v2511 = vpack.c.b16 %v2372, %v2371
    %v2512 = vpack.c.b16 %v2373, %v2373
    %v2513 = vpack.c.b16 %v2375, %v2374
    %v2514 = vpack.c.b16 %v2376, %v2376
    %v2515 = vpack.c.b16 %v2378, %v2377
    %v2516 = vpack.c.b16 %v2379, %v2379
    %v2517 = vpack.c.b16 %v2381, %v2380
    %v2518 = vpack.c.b16 %v2382, %v2382
    %v2519 = vpack.c.b16 %v2384, %v2383
    %v2520 = vpack.c.b16 %v2385, %v2385
    %v2521 = vpack.c.b16 %v2387, %v2386
    %v2522 = vpack.c.b16 %v2388, %v2388
    %v2523 = vpack.c.b16 %v2390, %v2389
    %v2524 = vpack.c.b16 %v2391, %v2391
    %v2525 = vpack.c.b16 %v2393, %v2392
    %v2526 = vpack.c.b16 %v2394, %v2394
    %v2527 = vpack.c.b16 %v2396, %v2395
    %v2528 = vpack.c.b16 %v2397, %v2397
    %v2529 = vpack.c.b16 %v2399, %v2398
    %v2530 = vpack.c.b16 %v2400, %v2400
    %v2531 = vpack.c.b16 %v2402, %v2401
    %v2532 = vpack.c.b16 %v2403, %v2403
    %v2533 = vpack.c.b16 %v2405, %v2404
    %v2534 = vpack.c.b16 %v2406, %v2406
    %2663 = vst [vmem:[%s2] sm:$0xff] %v2407
    %vm2664 = vcmask 519168
    %2665 = vst.msk [vmem:[%s2 + $0x8] sm:$0xf] %vm2664, %v2408
    %2666 = vst [vmem:[%s2 + $0xc] sm:$0xff] %v2409
    %2667 = vst.msk [vmem:[%s2 + $0x14] sm:$0xf] %vm2664, %v2410
    %2668 = vst [vmem:[%s2 + $0x18] sm:$0xff] %v2411
    %2669 = vst.msk [vmem:[%s2 + $0x20] sm:$0xf] %vm2664, %v2412
    %2670 = vst [vmem:[%s2 + $0x24] sm:$0xff] %v2413
    %2671 = vst.msk [vmem:[%s2 + $0x2c] sm:$0xf] %vm2664, %v2414
    %2672 = vst [vmem:[%s2 + $0x30] sm:$0xff] %v2415
    %2673 = vst.msk [vmem:[%s2 + $0x38] sm:$0xf] %vm2664, %v2416
    %2674 = vst [vmem:[%s2 + $0x3c] sm:$0xff] %v2417
    %2675 = vst.msk [vmem:[%s2 + $0x44] sm:$0xf] %vm2664, %v2418
    %2676 = vst [vmem:[%s2 + $0x48] sm:$0xff] %v2419
    %2677 = vst.msk [vmem:[%s2 + $0x50] sm:$0xf] %vm2664, %v2420
    %2678 = vst [vmem:[%s2 + $0x54] sm:$0xff] %v2421
    %2679 = vst.msk [vmem:[%s2 + $0x5c] sm:$0xf] %vm2664, %v2422
    %2680 = vst [vmem:[%s2 + $0x60] sm:$0xff] %v2423
    %2681 = vst.msk [vmem:[%s2 + $0x68] sm:$0xf] %vm2664, %v2424
    %2682 = vst [vmem:[%s2 + $0x6c] sm:$0xff] %v2425
    %2683 = vst.msk [vmem:[%s2 + $0x74] sm:$0xf] %vm2664, %v2426
    %2684 = vst [vmem:[%s2 + $0x78] sm:$0xff] %v2427
    %2685 = vst.msk [vmem:[%s2 + $0x80] sm:$0xf] %vm2664, %v2428
    %2686 = vst [vmem:[%s2 + $0x84] sm:$0xff] %v2429
    %2687 = vst.msk [vmem:[%s2 + $0x8c] sm:$0xf] %vm2664, %v2430
    %2688 = vst [vmem:[%s2 + $0x90] sm:$0xff] %v2431
    %2689 = vst.msk [vmem:[%s2 + $0x98] sm:$0xf] %vm2664, %v2432
    %2690 = vst [vmem:[%s2 + $0x9c] sm:$0xff] %v2433
    %2691 = vst.msk [vmem:[%s2 + $0xa4] sm:$0xf] %vm2664, %v2434
    %2692 = vst [vmem:[%s2 + $0xa8] sm:$0xff] %v2435
    %2693 = vst.msk [vmem:[%s2 + $0xb0] sm:$0xf] %vm2664, %v2436
    %2694 = vst [vmem:[%s2 + $0xb4] sm:$0xff] %v2437
    %2695 = vst.msk [vmem:[%s2 + $0xbc] sm:$0xf] %vm2664, %v2438
    %2696 = vst [vmem:[%s2 + $0xc0] sm:$0xff] %v2439
    %2697 = vst.msk [vmem:[%s2 + $0xc8] sm:$0xf] %vm2664, %v2440
    %2698 = vst [vmem:[%s2 + $0xcc] sm:$0xff] %v2441
    %2699 = vst.msk [vmem:[%s2 + $0xd4] sm:$0xf] %vm2664, %v2442
    %2700 = vst [vmem:[%s2 + $0xd8] sm:$0xff] %v2443
    %2701 = vst.msk [vmem:[%s2 + $0xe0] sm:$0xf] %vm2664, %v2444
    %2702 = vst [vmem:[%s2 + $0xe4] sm:$0xff] %v2445
    %2703 = vst.msk [vmem:[%s2 + $0xec] sm:$0xf] %vm2664, %v2446
    %2704 = vst [vmem:[%s2 + $0xf0] sm:$0xff] %v2447
    %2705 = vst.msk [vmem:[%s2 + $0xf8] sm:$0xf] %vm2664, %v2448
    %2706 = vst [vmem:[%s2 + $0xfc] sm:$0xff] %v2449
    %2707 = vst.msk [vmem:[%s2 + $0x104] sm:$0xf] %vm2664, %v2450
    %2708 = vst [vmem:[%s2 + $0x108] sm:$0xff] %v2451
    %2709 = vst.msk [vmem:[%s2 + $0x110] sm:$0xf] %vm2664, %v2452
    %2710 = vst [vmem:[%s2 + $0x114] sm:$0xff] %v2453
    %2711 = vst.msk [vmem:[%s2 + $0x11c] sm:$0xf] %vm2664, %v2454
    %2712 = vst [vmem:[%s2 + $0x120] sm:$0xff] %v2455
    %2713 = vst.msk [vmem:[%s2 + $0x128] sm:$0xf] %vm2664, %v2456
    %2714 = vst [vmem:[%s2 + $0x12c] sm:$0xff] %v2457
    %2715 = vst.msk [vmem:[%s2 + $0x134] sm:$0xf] %vm2664, %v2458
    %2716 = vst [vmem:[%s2 + $0x138] sm:$0xff] %v2459
    %2717 = vst.msk [vmem:[%s2 + $0x140] sm:$0xf] %vm2664, %v2460
    %2718 = vst [vmem:[%s2 + $0x144] sm:$0xff] %v2461
    %2719 = vst.msk [vmem:[%s2 + $0x14c] sm:$0xf] %vm2664, %v2462
    %2720 = vst [vmem:[%s2 + $0x150] sm:$0xff] %v2463
    %2721 = vst.msk [vmem:[%s2 + $0x158] sm:$0xf] %vm2664, %v2464
    %2722 = vst [vmem:[%s2 + $0x15c] sm:$0xff] %v2465
    %2723 = vst.msk [vmem:[%s2 + $0x164] sm:$0xf] %vm2664, %v2466
    %2724 = vst [vmem:[%s2 + $0x168] sm:$0xff] %v2467
    %2725 = vst.msk [vmem:[%s2 + $0x170] sm:$0xf] %vm2664, %v2468
    %2726 = vst [vmem:[%s2 + $0x174] sm:$0xff] %v2469
    %2727 = vst.msk [vmem:[%s2 + $0x17c] sm:$0xf] %vm2664, %v2470
    %2728 = vst [vmem:[%s2 + $0x180] sm:$0xff] %v2471
    %2729 = vst.msk [vmem:[%s2 + $0x188] sm:$0xf] %vm2664, %v2472
    %2730 = vst [vmem:[%s2 + $0x18c] sm:$0xff] %v2473
    %2731 = vst.msk [vmem:[%s2 + $0x194] sm:$0xf] %vm2664, %v2474
    %2732 = vst [vmem:[%s2 + $0x198] sm:$0xff] %v2475
    %2733 = vst.msk [vmem:[%s2 + $0x1a0] sm:$0xf] %vm2664, %v2476
    %2734 = vst [vmem:[%s2 + $0x1a4] sm:$0xff] %v2477
    %2735 = vst.msk [vmem:[%s2 + $0x1ac] sm:$0xf] %vm2664, %v2478
    %2736 = vst [vmem:[%s2 + $0x1b0] sm:$0xff] %v2479
    %2737 = vst.msk [vmem:[%s2 + $0x1b8] sm:$0xf] %vm2664, %v2480
    %2738 = vst [vmem:[%s2 + $0x1bc] sm:$0xff] %v2481
    %2739 = vst.msk [vmem:[%s2 + $0x1c4] sm:$0xf] %vm2664, %v2482
    %2740 = vst [vmem:[%s2 + $0x1c8] sm:$0xff] %v2483
    %2741 = vst.msk [vmem:[%s2 + $0x1d0] sm:$0xf] %vm2664, %v2484
    %2742 = vst [vmem:[%s2 + $0x1d4] sm:$0xff] %v2485
    %2743 = vst.msk [vmem:[%s2 + $0x1dc] sm:$0xf] %vm2664, %v2486
    %2744 = vst [vmem:[%s2 + $0x1e0] sm:$0xff] %v2487
    %2745 = vst.msk [vmem:[%s2 + $0x1e8] sm:$0xf] %vm2664, %v2488
    %2746 = vst [vmem:[%s2 + $0x1ec] sm:$0xff] %v2489
    %2747 = vst.msk [vmem:[%s2 + $0x1f4] sm:$0xf] %vm2664, %v2490
    %2748 = vst [vmem:[%s2 + $0x1f8] sm:$0xff] %v2491
    %2749 = vst.msk [vmem:[%s2 + $0x200] sm:$0xf] %vm2664, %v2492
    %2750 = vst [vmem:[%s2 + $0x204] sm:$0xff] %v2493
    %2751 = vst.msk [vmem:[%s2 + $0x20c] sm:$0xf] %vm2664, %v2494
    %2752 = vst [vmem:[%s2 + $0x210] sm:$0xff] %v2495
    %2753 = vst.msk [vmem:[%s2 + $0x218] sm:$0xf] %vm2664, %v2496
    %2754 = vst [vmem:[%s2 + $0x21c] sm:$0xff] %v2497
    %2755 = vst.msk [vmem:[%s2 + $0x224] sm:$0xf] %vm2664, %v2498
    %2756 = vst [vmem:[%s2 + $0x228] sm:$0xff] %v2499
    %2757 = vst.msk [vmem:[%s2 + $0x230] sm:$0xf] %vm2664, %v2500
    %2758 = vst [vmem:[%s2 + $0x234] sm:$0xff] %v2501
    %2759 = vst.msk [vmem:[%s2 + $0x23c] sm:$0xf] %vm2664, %v2502
    %2760 = vst [vmem:[%s2 + $0x240] sm:$0xff] %v2503
    %2761 = vst.msk [vmem:[%s2 + $0x248] sm:$0xf] %vm2664, %v2504
    %2762 = vst [vmem:[%s2 + $0x24c] sm:$0xff] %v2505
    %2763 = vst.msk [vmem:[%s2 + $0x254] sm:$0xf] %vm2664, %v2506
    %2764 = vst [vmem:[%s2 + $0x258] sm:$0xff] %v2507
    %2765 = vst.msk [vmem:[%s2 + $0x260] sm:$0xf] %vm2664, %v2508
    %2766 = vst [vmem:[%s2 + $0x264] sm:$0xff] %v2509
    %2767 = vst.msk [vmem:[%s2 + $0x26c] sm:$0xf] %vm2664, %v2510
    %2768 = vst [vmem:[%s2 + $0x270] sm:$0xff] %v2511
    %2769 = vst.msk [vmem:[%s2 + $0x278] sm:$0xf] %vm2664, %v2512
    %2770 = vst [vmem:[%s2 + $0x27c] sm:$0xff] %v2513
    %2771 = vst.msk [vmem:[%s2 + $0x284] sm:$0xf] %vm2664, %v2514
    %2772 = vst [vmem:[%s2 + $0x288] sm:$0xff] %v2515
    %2773 = vst.msk [vmem:[%s2 + $0x290] sm:$0xf] %vm2664, %v2516
    %2774 = vst [vmem:[%s2 + $0x294] sm:$0xff] %v2517
    %2775 = vst.msk [vmem:[%s2 + $0x29c] sm:$0xf] %vm2664, %v2518
    %2776 = vst [vmem:[%s2 + $0x2a0] sm:$0xff] %v2519
    %2777 = vst.msk [vmem:[%s2 + $0x2a8] sm:$0xf] %vm2664, %v2520
    %2778 = vst [vmem:[%s2 + $0x2ac] sm:$0xff] %v2521
    %2779 = vst.msk [vmem:[%s2 + $0x2b4] sm:$0xf] %vm2664, %v2522
    %2780 = vst [vmem:[%s2 + $0x2b8] sm:$0xff] %v2523
    %2781 = vst.msk [vmem:[%s2 + $0x2c0] sm:$0xf] %vm2664, %v2524
    %2782 = vst [vmem:[%s2 + $0x2c4] sm:$0xff] %v2525
    %2783 = vst.msk [vmem:[%s2 + $0x2cc] sm:$0xf] %vm2664, %v2526
    %2784 = vst [vmem:[%s2 + $0x2d0] sm:$0xff] %v2527
    %2785 = vst.msk [vmem:[%s2 + $0x2d8] sm:$0xf] %vm2664, %v2528
    %2786 = vst [vmem:[%s2 + $0x2dc] sm:$0xff] %v2529
    %2787 = vst.msk [vmem:[%s2 + $0x2e4] sm:$0xf] %vm2664, %v2530
    %2788 = vst [vmem:[%s2 + $0x2e8] sm:$0xff] %v2531
    %2789 = vst.msk [vmem:[%s2 + $0x2f0] sm:$0xf] %vm2664, %v2532
    %2790 = vst [vmem:[%s2 + $0x2f4] sm:$0xff] %v2533
    %2791 = vst.msk [vmem:[%s2 + $0x2fc] sm:$0xf] %vm2664, %v2534
  $region17: #{tpu_custom_call.1} parent=0 // pred_fallthru
    _
  // Predicated region
  $region18: #{tpu_custom_call.1} parent=0 // pred_check
    _
  $region19: #{tpu_custom_call.1} parent=0 // pred_check_branch
    %2793 = sbr.rel (0) target = $region21
  $region20: #{tpu_custom_call.1} parent=0 // pred_region
    _
  $region21: #{tpu_custom_call.1} parent=0 // pred_fallthru
    _
  // Predicated region
  $region22: #{tpu_custom_call.1} parent=0 // pred_check
    _
  $region23: #{tpu_custom_call.1} parent=0 // pred_check_branch
    %2795 = sbr.rel (0) target = $region25
  $region24: #{tpu_custom_call.1} parent=0 // pred_region
    _
  $region25: #{tpu_custom_call.1} parent=0 // pred_fallthru
    _

</llo_original>
